<compile_context>
chip_gen: v5e
topology: v5e:2x2
jax: 0.10.0
libtpu: 0.0.40
codegen_flags: <defaults>
</compile_context>

<pallas_src>
import functools

import jax
import jax.numpy as jnp
from jax.experimental import pallas as pl
from jax.experimental.pallas import tpu as pltpu

D_X = 64          # input / residual / output feature width
D_POS = 32        # pos embedding width
D_BLK = 4         # blocks embedding width
D_HDS = 8         # heads embedding width
D_H1 = 256        # fc1 out
D_H2 = 64         # fc2 out
D_OUT = 64        # fc3 out


def _round_up(n, m):
    return ((n + m - 1) // m) * m


def _cdiv(a, b):
    return (a + b - 1) // b


# ----------------------------- Pallas kernel ------------------------------ #
def _mlp_kernel(x_ref, p_ref, bh_ref,
                w1x_ref, wp_ref, wbh_ref, b1_ref,
                w2_ref, b2_ref,
                w3_ref, b3_ref,
                out_ref):
    """relu(fc1) -> relu(fc2) -> fc3 + x, with embeddings folded into fc1."""
    x = x_ref[...]                                    # (TM, 64) f32
    x_bf = x.astype(jnp.bfloat16)

    tm = x.shape[0]
    n_pos = wp_ref.shape[0]                           # 256 (padded to x128)
    n_bh = wbh_ref.shape[0]                           # 128 (6*12 padded)

    # One-hot selectors built on the VPU (iota + compare + select), consumed by
    # the MXU.  This replaces an HBM embedding slab with 12 B/row of indices.
    p_iota = jax.lax.broadcasted_iota(jnp.int32, (tm, n_pos), 1)
    ohp = jnp.where(p_iota == p_ref[...], 1.0, 0.0).astype(jnp.bfloat16)    # (TM, 256)
    bh_iota = jax.lax.broadcasted_iota(jnp.int32, (tm, n_bh), 1)
    ohbh = jnp.where(bh_iota == bh_ref[...], 1.0, 0.0).astype(jnp.bfloat16)  # (TM, 128)

    # fc1 (+ all embedding lookups), f32 accumulation, bf16 MXU operands.
    h1 = (jnp.dot(x_bf, w1x_ref[...], preferred_element_type=jnp.float32)
          + jnp.dot(ohp, wp_ref[...], preferred_element_type=jnp.float32)
          + jnp.dot(ohbh, wbh_ref[...], preferred_element_type=jnp.float32)
          + b1_ref[...])
    h1 = jnp.maximum(h1, 0.0).astype(jnp.bfloat16)                           # (TM, 256)

    h2 = jnp.dot(h1, w2_ref[...], preferred_element_type=jnp.float32) + b2_ref[...]
    h2 = jnp.maximum(h2, 0.0).astype(jnp.bfloat16)                           # (TM, 64)

    out_ref[...] = (jnp.dot(h2, w3_ref[...], preferred_element_type=jnp.float32)
                    + b3_ref[...] + x)                                       # (TM, 64) f32


# ----------------------- one-time parameter folding ------------------------ #
def prepare_params(params):
    """Fold embedding tables into fc1, pad, and cast weights to bf16 (once)."""
    w1 = params["w1"]                                  # (108, 256), rows = [x|pos|blk|hds]
    w1x = w1[0:D_X]                                    # (64, 256)
    w1p = w1[D_X:D_X + D_POS]                          # (32, 256)
    w1b = w1[D_X + D_POS:D_X + D_POS + D_BLK]          # (4, 256)
    w1h = w1[D_X + D_POS + D_BLK:]                     # (8, 256)

    emb_pos, emb_blk, emb_hds = params["emb_pos"], params["emb_blocks"], params["emb_heads"]
    num_pos, num_blocks, num_heads = emb_pos.shape[0], emb_blk.shape[0], emb_hds.shape[0]

    # pos table folded into fc1:  onehot(p) @ wp  ==  emb_pos[p] @ W1p
    wp = emb_pos @ w1p                                                  # (256, 256)
    wp = jnp.pad(wp, ((0, _round_up(num_pos, 128) - num_pos), (0, 0)))

    # blocks & heads combined into one table indexed by b*num_heads + h.
    wb = emb_blk @ w1b                                                  # (6, 256)
    wh = emb_hds @ w1h                                                  # (12, 256)
    wbh = (wb[:, None, :] + wh[None, :, :]).reshape(num_blocks * num_heads, D_H1)
    n_bh = num_blocks * num_heads
    wbh = jnp.pad(wbh, ((0, _round_up(n_bh, 128) - n_bh), (0, 0)))      # (128, 256)

    bf = lambda a: a.astype(jnp.bfloat16)
    return {
        "w1x": bf(w1x), "wp": bf(wp), "wbh": bf(wbh), "b1": params["b1"],
        "w2": bf(params["w2"]), "b2": params["b2"],
        "w3": bf(params["w3"]), "b3": params["b3"],
        "num_heads": int(num_heads),
    }


# ------------------------------ JAX wrapper -------------------------------- #
def key_network_forward(x, p, b, h, prepped, *, block_rows=1024):
    """Reproduces KeyNetworkDistilGPT2.forward.

    x: (N, 64) float32; p, b, h: (N,) integer embedding indices.
    """
    N = x.shape[0]

    p2 = p.astype(jnp.int32).reshape(N, 1)
    bh2 = (b.astype(jnp.int32) * prepped["num_heads"]
           + h.astype(jnp.int32)).reshape(N, 1)

    # Row tile: always a multiple of 8 sublanes; default 1024 rows amortizes
    # per-step overhead.  If the grid would collapse to one step, split it so
    # v7x's two TensorCores both get work on the "parallel" axis.
    tm = _round_up(min(block_rows, _round_up(N, 8)), 8)
    if _cdiv(N, tm) < 2 and N >= 16:
        tm = _round_up(_cdiv(N, 2), 8)
    n_pad = _round_up(N, tm)

    if n_pad != N:
        x_k = jnp.pad(x, ((0, n_pad - N), (0, 0)))
        p_k = jnp.pad(p2, ((0, n_pad - N), (0, 0)))
        bh_k = jnp.pad(bh2, ((0, n_pad - N), (0, 0)))
    else:
        x_k, p_k, bh_k = x, p2, bh2

    grid = (n_pad // tm,)

    def row_spec(d):       # activation tiles march over the batch dimension
        return pl.BlockSpec((tm, d), lambda i: (i, 0))

    def resident_spec(s):  # weights / biases stay resident in VMEM
        return pl.BlockSpec(s, lambda i: (0, 0))

    wp, wbh = prepped["wp"], prepped["wbh"]

    out = pl.pallas_call(
        _mlp_kernel,
        out_shape=jax.ShapeDtypeStruct((n_pad, D_OUT), jnp.float32),
        grid=grid,
        in_specs=[
            row_spec(D_X),                        # x (also residual), f32
            row_spec(1),                          # p indices, i32
            row_spec(1),                          # combined b*nh+h indices, i32
            resident_spec((D_X, D_H1)),           # W1x           bf16
            resident_spec((wp.shape[0], D_H1)),   # folded pos    bf16
            resident_spec((wbh.shape[0], D_H1)),  # folded blk/hd bf16
            resident_spec((1, D_H1)),             # b1            f32
            resident_spec((D_H1, D_H2)),          # W2            bf16
            resident_spec((1, D_H2)),             # b2            f32
            resident_spec((D_H2, D_OUT)),         # W3            bf16
            resident_spec((1, D_OUT)),            # b3            f32
        ],
        out_specs=row_spec(D_OUT),
        compiler_params=pltpu.CompilerParams(
            dimension_semantics=("parallel",)),
    )(x_k, p_k, bh_k,
      prepped["w1x"], wp, wbh, prepped["b1"],
      prepped["w2"], prepped["b2"],
      prepped["w3"], prepped["b3"])

    return out[:N]


# --------------------------- parameter creation ---------------------------- #
def init_params(key,
                num_pos=256, num_blocks=6, num_heads=12,
                emb_pos_dim=32, emb_blocks_dim=4, emb_heads_dim=8):
    d_in = D_X + emb_pos_dim + emb_blocks_dim + emb_heads_dim        # 108
    keys = jax.random.split(key, 9)

    def lin(kw, kb, fan_in, fan_out):
        # Weights stored (in, out) = PyTorch W^T.
        bound = 1.0 / jnp.sqrt(fan_in)
        w = jax.random.uniform(kw, (fan_in, fan_out), jnp.float32, -bound, bound)
        bvec = jax.random.uniform(kb, (1, fan_out), jnp.float32, -bound, bound)
        return w, bvec

    w1, b1 = lin(keys[0], keys[1], d_in, D_H1)     # 108 -> 256
    w2, b2 = lin(keys[2], keys[3], D_H1, D_H2)     # 256 -> 64
    w3, b3 = lin(keys[4], keys[5], D_H2, D_OUT)    # 64  -> 64

    return {
        "emb_pos": jax.random.normal(keys[6], (num_pos, emb_pos_dim), jnp.float32),
        "emb_blocks": jax.random.normal(keys[7], (num_blocks, emb_blocks_dim), jnp.float32),
        "emb_heads": jax.random.normal(keys[8], (num_heads, emb_heads_dim), jnp.float32),
        "w1": w1, "b1": b1,
        "w2": w2, "b2": b2,
        "w3": w3, "b3": b3,
    }


# --------------------------------- main ------------------------------------ #
if __name__ == "__main__":
    key = jax.random.PRNGKey(0)
    k_param, k_x, k_p, k_b, k_h = jax.random.split(key, 5)

    params = init_params(k_param)
    prepped = prepare_params(params)   # one-time fold/pad/bf16, outside jit

    # N not a multiple of the tile exercises padding; the >=2-step split is
    # exercised because block_rows (1024) > N.
    N = 300
    x = jax.random.normal(k_x, (N, D_X), jnp.float32)
    p = jax.random.randint(k_p, (N,), 0, 256, jnp.int32)
    b = jax.random.randint(k_b, (N,), 0, 6, jnp.int32)
    h = jax.random.randint(k_h, (N,), 0, 12, jnp.int32)

    fwd = jax.jit(functools.partial(key_network_forward, block_rows=1024))
    out = fwd(x, p, b, h, prepped)
    jax.block_until_ready(out)

    # Pure-f32 JAX reference of the original module math.
    feat = jnp.concatenate([x,
                            jnp.take(params["emb_pos"], p, axis=0),
                            jnp.take(params["emb_blocks"], b, axis=0),
                            jnp.take(params["emb_heads"], h, axis=0)], axis=1)
    h1 = jnp.maximum(feat @ params["w1"] + params["b1"], 0.0)
    h2 = jnp.maximum(h1 @ params["w2"] + params["b2"], 0.0)
    ref = h2 @ params["w3"] + params["b3"] + x

    assert out.shape == (N, D_OUT)
    max_err = float(jnp.max(jnp.abs(out - ref)))
    # bf16 matmul operands (f32 accumulation) -> ~1e-3..1e-2 level error vs f32.
    assert max_err < 5e-2, f"mismatch vs reference, max_err={max_err}"

    print("KERNEL_OK")
</pallas_src>

<mosaic_0001>
module attributes {stable_mosaic.version = 11 : i64} {
  func.func @_mlp_kernel(%arg0: i32, %arg1: memref<152x64xf32, #tpu.memory_space<vmem>>, %arg2: memref<152x1xi32, #tpu.memory_space<vmem>>, %arg3: memref<152x1xi32, #tpu.memory_space<vmem>>, %arg4: memref<64x256xbf16, #tpu.memory_space<vmem>>, %arg5: memref<256x256xbf16, #tpu.memory_space<vmem>>, %arg6: memref<128x256xbf16, #tpu.memory_space<vmem>>, %arg7: memref<1x256xf32, #tpu.memory_space<vmem>>, %arg8: memref<256x64xbf16, #tpu.memory_space<vmem>>, %arg9: memref<1x64xf32, #tpu.memory_space<vmem>>, %arg10: memref<64x64xbf16, #tpu.memory_space<vmem>>, %arg11: memref<1x64xf32, #tpu.memory_space<vmem>>, %arg12: memref<152x64xf32, #tpu.memory_space<vmem>>) attributes {dimension_semantics = [#tpu.dimension_semantics<parallel>], iteration_bounds = array<i64: 2>, scalar_prefetch = 0 : i64, scratch_operands = 0 : i64, tpu.core_type = #tpu.core_type<tc>, window_params = [{transform_indices = @transform_0, window_bounds = array<i64: 152, 64>}, {transform_indices = @transform_1, window_bounds = array<i64: 152, 1>}, {transform_indices = @transform_2, window_bounds = array<i64: 152, 1>}, {pipeline_mode = #tpu.pipeline_mode<synchronous>, transform_indices = @transform_3, window_bounds = array<i64: 64, 256>}, {pipeline_mode = #tpu.pipeline_mode<synchronous>, transform_indices = @transform_4, window_bounds = array<i64: 256, 256>}, {pipeline_mode = #tpu.pipeline_mode<synchronous>, transform_indices = @transform_5, window_bounds = array<i64: 128, 256>}, {pipeline_mode = #tpu.pipeline_mode<synchronous>, transform_indices = @transform_6, window_bounds = array<i64: 1, 256>}, {pipeline_mode = #tpu.pipeline_mode<synchronous>, transform_indices = @transform_7, window_bounds = array<i64: 256, 64>}, {pipeline_mode = #tpu.pipeline_mode<synchronous>, transform_indices = @transform_8, window_bounds = array<i64: 1, 64>}, {pipeline_mode = #tpu.pipeline_mode<synchronous>, transform_indices = @transform_9, window_bounds = array<i64: 64, 64>}, {pipeline_mode = #tpu.pipeline_mode<synchronous>, transform_indices = @transform_10, window_bounds = array<i64: 1, 64>}, {transform_indices = @transform_11, window_bounds = array<i64: 152, 64>}]} {
    %c0 = arith.constant 0 : index
    %c0_0 = arith.constant 0 : index
    %0 = vector.load %arg1[%c0, %c0_0] : memref<152x64xf32, #tpu.memory_space<vmem>>, vector<152x64xf32>
    %1 = arith.truncf %0 : vector<152x64xf32> to vector<152x64xbf16>
    %2 = tpu.iota {dimensions = array<i32: 1>} : vector<152x256xi32>
    %c0_1 = arith.constant 0 : index
    %c0_2 = arith.constant 0 : index
    %3 = vector.load %arg2[%c0_1, %c0_2] : memref<152x1xi32, #tpu.memory_space<vmem>>, vector<152x1xi32>
    %4 = vector.broadcast %3 : vector<152x1xi32> to vector<152x256xi32>
    %5 = arith.cmpi eq, %2, %4 : vector<152x256xi32>
    %cst = arith.constant 1.000000e+00 : f32
    %cst_3 = arith.constant 0.000000e+00 : f32
    %6 = vector.broadcast %cst : f32 to vector<152x256xf32>
    %7 = vector.broadcast %cst_3 : f32 to vector<152x256xf32>
    %8 = arith.select %5, %6, %7 : vector<152x256xi1>, vector<152x256xf32>
    %9 = arith.truncf %8 : vector<152x256xf32> to vector<152x256xbf16>
    %10 = tpu.iota {dimensions = array<i32: 1>} : vector<152x128xi32>
    %c0_4 = arith.constant 0 : index
    %c0_5 = arith.constant 0 : index
    %11 = vector.load %arg3[%c0_4, %c0_5] : memref<152x1xi32, #tpu.memory_space<vmem>>, vector<152x1xi32>
    %12 = vector.broadcast %11 : vector<152x1xi32> to vector<152x128xi32>
    %13 = arith.cmpi eq, %10, %12 : vector<152x128xi32>
    %cst_6 = arith.constant 1.000000e+00 : f32
    %cst_7 = arith.constant 0.000000e+00 : f32
    %14 = vector.broadcast %cst_6 : f32 to vector<152x128xf32>
    %15 = vector.broadcast %cst_7 : f32 to vector<152x128xf32>
    %16 = arith.select %13, %14, %15 : vector<152x128xi1>, vector<152x128xf32>
    %17 = arith.truncf %16 : vector<152x128xf32> to vector<152x128xbf16>
    %c0_8 = arith.constant 0 : index
    %c0_9 = arith.constant 0 : index
    %18 = vector.load %arg4[%c0_8, %c0_9] : memref<64x256xbf16, #tpu.memory_space<vmem>>, vector<64x256xbf16>
    %cst_10 = arith.constant dense<0.000000e+00> : vector<152x256xf32>
    %19 = tpu.matmul %1, %18, %cst_10 {dimension_numbers = #tpu.dot_dimension_numbers<[1], [0], [0], [1], [0, 0, 1, 1], [], []>} : vector<152x64xbf16>, vector<64x256xbf16>, vector<152x256xf32> -> vector<152x256xf32>
    %c0_11 = arith.constant 0 : index
    %c0_12 = arith.constant 0 : index
    %20 = vector.load %arg5[%c0_11, %c0_12] : memref<256x256xbf16, #tpu.memory_space<vmem>>, vector<256x256xbf16>
    %cst_13 = arith.constant dense<0.000000e+00> : vector<152x256xf32>
    %21 = tpu.matmul %9, %20, %cst_13 {dimension_numbers = #tpu.dot_dimension_numbers<[1], [0], [0], [1], [0, 0, 1, 1], [], []>} : vector<152x256xbf16>, vector<256x256xbf16>, vector<152x256xf32> -> vector<152x256xf32>
    %22 = arith.addf %19, %21 : vector<152x256xf32>
    %c0_14 = arith.constant 0 : index
    %c0_15 = arith.constant 0 : index
    %23 = vector.load %arg6[%c0_14, %c0_15] : memref<128x256xbf16, #tpu.memory_space<vmem>>, vector<128x256xbf16>
    %cst_16 = arith.constant dense<0.000000e+00> : vector<152x256xf32>
    %24 = tpu.matmul %17, %23, %cst_16 {dimension_numbers = #tpu.dot_dimension_numbers<[1], [0], [0], [1], [0, 0, 1, 1], [], []>} : vector<152x128xbf16>, vector<128x256xbf16>, vector<152x256xf32> -> vector<152x256xf32>
    %25 = arith.addf %22, %24 : vector<152x256xf32>
    %c0_17 = arith.constant 0 : index
    %c0_18 = arith.constant 0 : index
    %26 = vector.load %arg7[%c0_17, %c0_18] : memref<1x256xf32, #tpu.memory_space<vmem>>, vector<1x256xf32>
    %27 = vector.broadcast %26 : vector<1x256xf32> to vector<152x256xf32>
    %28 = arith.addf %25, %27 : vector<152x256xf32>
    %cst_19 = arith.constant 0.000000e+00 : f32
    %29 = vector.broadcast %cst_19 : f32 to vector<152x256xf32>
    %30 = arith.maximumf %28, %29 : vector<152x256xf32>
    %31 = arith.truncf %30 : vector<152x256xf32> to vector<152x256xbf16>
    %c0_20 = arith.constant 0 : index
    %c0_21 = arith.constant 0 : index
    %32 = vector.load %arg8[%c0_20, %c0_21] : memref<256x64xbf16, #tpu.memory_space<vmem>>, vector<256x64xbf16>
    %cst_22 = arith.constant dense<0.000000e+00> : vector<152x64xf32>
    %33 = tpu.matmul %31, %32, %cst_22 {dimension_numbers = #tpu.dot_dimension_numbers<[1], [0], [0], [1], [0, 0, 1, 1], [], []>} : vector<152x256xbf16>, vector<256x64xbf16>, vector<152x64xf32> -> vector<152x64xf32>
    %c0_23 = arith.constant 0 : index
    %c0_24 = arith.constant 0 : index
    %34 = vector.load %arg9[%c0_23, %c0_24] : memref<1x64xf32, #tpu.memory_space<vmem>>, vector<1x64xf32>
    %35 = vector.broadcast %34 : vector<1x64xf32> to vector<152x64xf32>
    %36 = arith.addf %33, %35 : vector<152x64xf32>
    %cst_25 = arith.constant 0.000000e+00 : f32
    %37 = vector.broadcast %cst_25 : f32 to vector<152x64xf32>
    %38 = arith.maximumf %36, %37 : vector<152x64xf32>
    %39 = arith.truncf %38 : vector<152x64xf32> to vector<152x64xbf16>
    %c0_26 = arith.constant 0 : index
    %c0_27 = arith.constant 0 : index
    %40 = vector.load %arg10[%c0_26, %c0_27] : memref<64x64xbf16, #tpu.memory_space<vmem>>, vector<64x64xbf16>
    %cst_28 = arith.constant dense<0.000000e+00> : vector<152x64xf32>
    %41 = tpu.matmul %39, %40, %cst_28 {dimension_numbers = #tpu.dot_dimension_numbers<[1], [0], [0], [1], [0, 0, 1, 1], [], []>} : vector<152x64xbf16>, vector<64x64xbf16>, vector<152x64xf32> -> vector<152x64xf32>
    %c0_29 = arith.constant 0 : index
    %c0_30 = arith.constant 0 : index
    %42 = vector.load %arg11[%c0_29, %c0_30] : memref<1x64xf32, #tpu.memory_space<vmem>>, vector<1x64xf32>
    %43 = vector.broadcast %42 : vector<1x64xf32> to vector<152x64xf32>
    %44 = arith.addf %41, %43 : vector<152x64xf32>
    %45 = arith.addf %44, %0 : vector<152x64xf32>
    %c0_31 = arith.constant 0 : index
    %c0_32 = arith.constant 0 : index
    %46 = vector.load %arg12[%c0_31, %c0_32] : memref<152x64xf32, #tpu.memory_space<vmem>>, vector<152x64xf32>
    tpu.vector_store %arg12[%c0_31, %c0_32], %45 {strides = array<i32>} : memref<152x64xf32, #tpu.memory_space<vmem>>, vector<152x64xf32>,
    return
  }
  func.func @transform_0(%arg0: i32) -> (i32, i32) {
    %c0_i32 = arith.constant 0 : i32
    %c0_i32_0 = arith.constant 0 : i32
    return %arg0, %c0_i32 : i32, i32
  }
  func.func @transform_1(%arg0: i32) -> (i32, i32) {
    %c0_i32 = arith.constant 0 : i32
    %c0_i32_0 = arith.constant 0 : i32
    return %arg0, %c0_i32 : i32, i32
  }
  func.func @transform_2(%arg0: i32) -> (i32, i32) {
    %c0_i32 = arith.constant 0 : i32
    %c0_i32_0 = arith.constant 0 : i32
    return %arg0, %c0_i32 : i32, i32
  }
  func.func @transform_3(%arg0: i32) -> (i32, i32) {
    %c0_i32 = arith.constant 0 : i32
    %c0_i32_0 = arith.constant 0 : i32
    %c0_i32_1 = arith.constant 0 : i32
    return %c0_i32, %c0_i32_0 : i32, i32
  }
  func.func @transform_4(%arg0: i32) -> (i32, i32) {
    %c0_i32 = arith.constant 0 : i32
    %c0_i32_0 = arith.constant 0 : i32
    %c0_i32_1 = arith.constant 0 : i32
    return %c0_i32, %c0_i32_0 : i32, i32
  }
  func.func @transform_5(%arg0: i32) -> (i32, i32) {
    %c0_i32 = arith.constant 0 : i32
    %c0_i32_0 = arith.constant 0 : i32
    %c0_i32_1 = arith.constant 0 : i32
    return %c0_i32, %c0_i32_0 : i32, i32
  }
  func.func @transform_6(%arg0: i32) -> (i32, i32) {
    %c0_i32 = arith.constant 0 : i32
    %c0_i32_0 = arith.constant 0 : i32
    %c0_i32_1 = arith.constant 0 : i32
    return %c0_i32, %c0_i32_0 : i32, i32
  }
  func.func @transform_7(%arg0: i32) -> (i32, i32) {
    %c0_i32 = arith.constant 0 : i32
    %c0_i32_0 = arith.constant 0 : i32
    %c0_i32_1 = arith.constant 0 : i32
    return %c0_i32, %c0_i32_0 : i32, i32
  }
  func.func @transform_8(%arg0: i32) -> (i32, i32) {
    %c0_i32 = arith.constant 0 : i32
    %c0_i32_0 = arith.constant 0 : i32
    %c0_i32_1 = arith.constant 0 : i32
    return %c0_i32, %c0_i32_0 : i32, i32
  }
  func.func @transform_9(%arg0: i32) -> (i32, i32) {
    %c0_i32 = arith.constant 0 : i32
    %c0_i32_0 = arith.constant 0 : i32
    %c0_i32_1 = arith.constant 0 : i32
    return %c0_i32, %c0_i32_0 : i32, i32
  }
  func.func @transform_10(%arg0: i32) -> (i32, i32) {
    %c0_i32 = arith.constant 0 : i32
    %c0_i32_0 = arith.constant 0 : i32
    %c0_i32_1 = arith.constant 0 : i32
    return %c0_i32, %c0_i32_0 : i32, i32
  }
  func.func @transform_11(%arg0: i32) -> (i32, i32) {
    %c0_i32 = arith.constant 0 : i32
    %c0_i32_0 = arith.constant 0 : i32
    return %arg0, %c0_i32 : i32, i32
  }
}

</mosaic_0001>

<llo_original>
// kernel: key_network_forward.1
$region0: #{key_network_forward.1}
  #allocation0 [shape = 'u32[]', space=smem, size = 0x4, offset = 0x4, fixed_abs, tag = 'smem constant byte address 0x4 - core index']
  #allocation1 [shape = 'u32[72,128]{1,0:T(1,128)}', space=vmem, size = 0x9000, scoped, tag = 'internal scratch']
  %s0 = inlined_call_operand.vmem [shape: f32[304,64], index: 0, kind: input, shape index: {}]
  %s1 = inlined_call_operand.vmem [shape: s32[304,1], index: 1, kind: input, shape index: {}]
  %s2 = inlined_call_operand.vmem [shape: s32[304,1], index: 2, kind: input, shape index: {}]
  %s3 = inlined_call_operand.vmem [shape: bf16[64,256], index: 3, kind: input, shape index: {}]
  %s4 = inlined_call_operand.vmem [shape: bf16[256,256], index: 4, kind: input, shape index: {}]
  %s5 = inlined_call_operand.vmem [shape: bf16[128,256], index: 5, kind: input, shape index: {}]
  %s6 = inlined_call_operand.vmem [shape: f32[1,256], index: 6, kind: input, shape index: {}]
  %s7 = inlined_call_operand.vmem [shape: bf16[256,64], index: 7, kind: input, shape index: {}]
  %s8 = inlined_call_operand.vmem [shape: f32[1,64], index: 8, kind: input, shape index: {}]
  %s9 = inlined_call_operand.vmem [shape: bf16[64,64], index: 9, kind: input, shape index: {}]
  %s10 = inlined_call_operand.vmem [shape: f32[1,64], index: 10, kind: input, shape index: {}]
  %s11 = inlined_call_operand.vmem [shape: f32[304,64], index: 11, kind: output, shape index: {}]
  %s12 = sld [smem:[#allocation0]]
  $region77: #{key_network_forward.1} parent=0
    _
  %s14 = ssub.s32 1, %s12
  %s15 = scalar_select 0, %s14, %s12
  loop: start=0, step=1, limit=4
  $region2: #{key_network_forward.1} parent=0 // loop_pre_header
    _
  $region3: #{key_network_forward.1} parent=0 // loop_header
    %s17 = sphi 0, %s21
    %p18 = scmp.ge.s32.totalorder %s17, 4
    %s27 = sphi 0, %s29
    %s30 = sphi 0, %s27
    %s31 = sphi 0, %s30
    %s47 = sphi 0, %s31
    %s53 = sphi 0, %s55
    %s56 = sphi 0, %s53
    %s57 = sphi 0, %s56
    %s73 = sphi 0, %s57
    %s79 = sphi 0, %s81
    %s82 = sphi 0, %s79
    %s83 = sphi 0, %s82
    %s99 = sphi 0, %s83
    %s103 = sphi 0, %s103
    %s105 = sphi 0, %s103
    %s106 = sphi 0, %s105
    %s120 = sphi 0, %s106
    %s124 = sphi 0, %s124
    %s126 = sphi 0, %s124
    %s127 = sphi 0, %s126
    %s141 = sphi 0, %s127
    %s145 = sphi 0, %s145
    %s147 = sphi 0, %s145
    %s148 = sphi 0, %s147
    %s162 = sphi 0, %s148
    %s166 = sphi 0, %s166
    %s168 = sphi 0, %s166
    %s169 = sphi 0, %s168
    %s183 = sphi 0, %s169
    %s187 = sphi 0, %s187
    %s189 = sphi 0, %s187
    %s190 = sphi 0, %s189
    %s204 = sphi 0, %s190
    %s208 = sphi 0, %s208
    %s210 = sphi 0, %s208
    %s211 = sphi 0, %s210
    %s225 = sphi 0, %s211
    %s229 = sphi 0, %s229
    %s231 = sphi 0, %s229
    %s232 = sphi 0, %s231
    %s246 = sphi 0, %s232
    %s250 = sphi 0, %s250
    %s252 = sphi 0, %s250
    %s253 = sphi 0, %s252
    %s267 = sphi 0, %s253
    %s273 = sphi 0, %s275
    %s276 = sphi 0, %s273
    %s277 = sphi 0, %s276
    %s293 = sphi 0, %s277
  $region4: #{key_network_forward.1} parent=0 // loop_header_branch
    %20 = sbr.rel (%p18) target = $region8
  $region5: #{key_network_forward.1} parent=0 // loop_body
    %s22 = ssub.s32 %s17, 1
    %s23 = ssub.s32 %s17, 2
    %s24 = sadd.s32 %s17, 1
    %s25 = ssub.s32 %s17, %s24
    %p26 = scmp.eq.s32.totalorder %s25, 0
    %s28 = sadd.s32 %s27, 1
    %s29 = scalar_select %p26, %s27, %s28
    %p32 = pneg %p26
    %p33 = scmp.eq.s32.totalorder %s17, 1
    %p34 = por %p32, %p33
    %p35 = scmp.ne.s32.totalorder %s27, %s30
    %p36 = scmp.eq.s32.totalorder %s17, 0
    %p37 = por %p35, %p36
    %p38 = scmp.ne.s32.totalorder %s27, %s30
    %p39 = scmp.eq.s32.totalorder %s22, 1
    %p40 = por %p38, %p39
    %p41 = scmp.ne.s32.totalorder %s30, %s31
    %p42 = scmp.eq.s32.totalorder %s22, 0
    %p43 = por %p41, %p42
    %p44 = scmp.ne.s32.totalorder %s30, %s31
    %p45 = scmp.eq.s32.totalorder %s23, 1
    %p46 = por %p44, %p45
    %p48 = scmp.ne.s32.totalorder %s31, %s47
    %p49 = scmp.eq.s32.totalorder %s23, 0
    %p50 = por %p48, %p49
    %s51 = ssub.s32 %s17, %s24
    %p52 = scmp.eq.s32.totalorder %s51, 0
    %s54 = sadd.s32 %s53, 1
    %s55 = scalar_select %p52, %s53, %s54
    %p58 = pneg %p52
    %p59 = scmp.eq.s32.totalorder %s17, 1
    %p60 = por %p58, %p59
    %p61 = scmp.ne.s32.totalorder %s53, %s56
    %p62 = scmp.eq.s32.totalorder %s17, 0
    %p63 = por %p61, %p62
    %p64 = scmp.ne.s32.totalorder %s53, %s56
    %p65 = scmp.eq.s32.totalorder %s22, 1
    %p66 = por %p64, %p65
    %p67 = scmp.ne.s32.totalorder %s56, %s57
    %p68 = scmp.eq.s32.totalorder %s22, 0
    %p69 = por %p67, %p68
    %p70 = scmp.ne.s32.totalorder %s56, %s57
    %p71 = scmp.eq.s32.totalorder %s23, 1
    %p72 = por %p70, %p71
    %p74 = scmp.ne.s32.totalorder %s57, %s73
    %p75 = scmp.eq.s32.totalorder %s23, 0
    %p76 = por %p74, %p75
    %s77 = ssub.s32 %s17, %s24
    %p78 = scmp.eq.s32.totalorder %s77, 0
    %s80 = sadd.s32 %s79, 1
    %s81 = scalar_select %p78, %s79, %s80
    %p84 = pneg %p78
    %p85 = scmp.eq.s32.totalorder %s17, 1
    %p86 = por %p84, %p85
    %p87 = scmp.ne.s32.totalorder %s79, %s82
    %p88 = scmp.eq.s32.totalorder %s17, 0
    %p89 = por %p87, %p88
    %p90 = scmp.ne.s32.totalorder %s79, %s82
    %p91 = scmp.eq.s32.totalorder %s22, 1
    %p92 = por %p90, %p91
    %p93 = scmp.ne.s32.totalorder %s82, %s83
    %p94 = scmp.eq.s32.totalorder %s22, 0
    %p95 = por %p93, %p94
    %p96 = scmp.ne.s32.totalorder %s82, %s83
    %p97 = scmp.eq.s32.totalorder %s23, 1
    %p98 = por %p96, %p97
    %p100 = scmp.ne.s32.totalorder %s83, %s99
    %p101 = scmp.eq.s32.totalorder %s23, 0
    %p102 = por %p100, %p101
    %s104 = sadd.s32 %s103, 1
    %p107 = scmp.eq.s32.totalorder %s17, 1
    %p108 = scmp.ne.s32.totalorder %s103, %s105
    %p109 = scmp.eq.s32.totalorder %s17, 0
    %p110 = por %p108, %p109
    %p111 = scmp.ne.s32.totalorder %s103, %s105
    %p112 = scmp.eq.s32.totalorder %s22, 1
    %p113 = por %p111, %p112
    %p114 = scmp.ne.s32.totalorder %s105, %s106
    %p115 = scmp.eq.s32.totalorder %s22, 0
    %p116 = por %p114, %p115
    %p117 = scmp.ne.s32.totalorder %s105, %s106
    %p118 = scmp.eq.s32.totalorder %s23, 1
    %p119 = por %p117, %p118
    %p121 = scmp.ne.s32.totalorder %s106, %s120
    %p122 = scmp.eq.s32.totalorder %s23, 0
    %p123 = por %p121, %p122
    %s125 = sadd.s32 %s124, 1
    %p128 = scmp.eq.s32.totalorder %s17, 1
    %p129 = scmp.ne.s32.totalorder %s124, %s126
    %p130 = scmp.eq.s32.totalorder %s17, 0
    %p131 = por %p129, %p130
    %p132 = scmp.ne.s32.totalorder %s124, %s126
    %p133 = scmp.eq.s32.totalorder %s22, 1
    %p134 = por %p132, %p133
    %p135 = scmp.ne.s32.totalorder %s126, %s127
    %p136 = scmp.eq.s32.totalorder %s22, 0
    %p137 = por %p135, %p136
    %p138 = scmp.ne.s32.totalorder %s126, %s127
    %p139 = scmp.eq.s32.totalorder %s23, 1
    %p140 = por %p138, %p139
    %p142 = scmp.ne.s32.totalorder %s127, %s141
    %p143 = scmp.eq.s32.totalorder %s23, 0
    %p144 = por %p142, %p143
    %s146 = sadd.s32 %s145, 1
    %p149 = scmp.eq.s32.totalorder %s17, 1
    %p150 = scmp.ne.s32.totalorder %s145, %s147
    %p151 = scmp.eq.s32.totalorder %s17, 0
    %p152 = por %p150, %p151
    %p153 = scmp.ne.s32.totalorder %s145, %s147
    %p154 = scmp.eq.s32.totalorder %s22, 1
    %p155 = por %p153, %p154
    %p156 = scmp.ne.s32.totalorder %s147, %s148
    %p157 = scmp.eq.s32.totalorder %s22, 0
    %p158 = por %p156, %p157
    %p159 = scmp.ne.s32.totalorder %s147, %s148
    %p160 = scmp.eq.s32.totalorder %s23, 1
    %p161 = por %p159, %p160
    %p163 = scmp.ne.s32.totalorder %s148, %s162
    %p164 = scmp.eq.s32.totalorder %s23, 0
    %p165 = por %p163, %p164
    %s167 = sadd.s32 %s166, 1
    %p170 = scmp.eq.s32.totalorder %s17, 1
    %p171 = scmp.ne.s32.totalorder %s166, %s168
    %p172 = scmp.eq.s32.totalorder %s17, 0
    %p173 = por %p171, %p172
    %p174 = scmp.ne.s32.totalorder %s166, %s168
    %p175 = scmp.eq.s32.totalorder %s22, 1
    %p176 = por %p174, %p175
    %p177 = scmp.ne.s32.totalorder %s168, %s169
    %p178 = scmp.eq.s32.totalorder %s22, 0
    %p179 = por %p177, %p178
    %p180 = scmp.ne.s32.totalorder %s168, %s169
    %p181 = scmp.eq.s32.totalorder %s23, 1
    %p182 = por %p180, %p181
    %p184 = scmp.ne.s32.totalorder %s169, %s183
    %p185 = scmp.eq.s32.totalorder %s23, 0
    %p186 = por %p184, %p185
    %s188 = sadd.s32 %s187, 1
    %p191 = scmp.eq.s32.totalorder %s17, 1
    %p192 = scmp.ne.s32.totalorder %s187, %s189
    %p193 = scmp.eq.s32.totalorder %s17, 0
    %p194 = por %p192, %p193
    %p195 = scmp.ne.s32.totalorder %s187, %s189
    %p196 = scmp.eq.s32.totalorder %s22, 1
    %p197 = por %p195, %p196
    %p198 = scmp.ne.s32.totalorder %s189, %s190
    %p199 = scmp.eq.s32.totalorder %s22, 0
    %p200 = por %p198, %p199
    %p201 = scmp.ne.s32.totalorder %s189, %s190
    %p202 = scmp.eq.s32.totalorder %s23, 1
    %p203 = por %p201, %p202
    %p205 = scmp.ne.s32.totalorder %s190, %s204
    %p206 = scmp.eq.s32.totalorder %s23, 0
    %p207 = por %p205, %p206
    %s209 = sadd.s32 %s208, 1
    %p212 = scmp.eq.s32.totalorder %s17, 1
    %p213 = scmp.ne.s32.totalorder %s208, %s210
    %p214 = scmp.eq.s32.totalorder %s17, 0
    %p215 = por %p213, %p214
    %p216 = scmp.ne.s32.totalorder %s208, %s210
    %p217 = scmp.eq.s32.totalorder %s22, 1
    %p218 = por %p216, %p217
    %p219 = scmp.ne.s32.totalorder %s210, %s211
    %p220 = scmp.eq.s32.totalorder %s22, 0
    %p221 = por %p219, %p220
    %p222 = scmp.ne.s32.totalorder %s210, %s211
    %p223 = scmp.eq.s32.totalorder %s23, 1
    %p224 = por %p222, %p223
    %p226 = scmp.ne.s32.totalorder %s211, %s225
    %p227 = scmp.eq.s32.totalorder %s23, 0
    %p228 = por %p226, %p227
    %s230 = sadd.s32 %s229, 1
    %p233 = scmp.eq.s32.totalorder %s17, 1
    %p234 = scmp.ne.s32.totalorder %s229, %s231
    %p235 = scmp.eq.s32.totalorder %s17, 0
    %p236 = por %p234, %p235
    %p237 = scmp.ne.s32.totalorder %s229, %s231
    %p238 = scmp.eq.s32.totalorder %s22, 1
    %p239 = por %p237, %p238
    %p240 = scmp.ne.s32.totalorder %s231, %s232
    %p241 = scmp.eq.s32.totalorder %s22, 0
    %p242 = por %p240, %p241
    %p243 = scmp.ne.s32.totalorder %s231, %s232
    %p244 = scmp.eq.s32.totalorder %s23, 1
    %p245 = por %p243, %p244
    %p247 = scmp.ne.s32.totalorder %s232, %s246
    %p248 = scmp.eq.s32.totalorder %s23, 0
    %p249 = por %p247, %p248
    %s251 = sadd.s32 %s250, 1
    %p254 = scmp.eq.s32.totalorder %s17, 1
    %p255 = scmp.ne.s32.totalorder %s250, %s252
    %p256 = scmp.eq.s32.totalorder %s17, 0
    %p257 = por %p255, %p256
    %p258 = scmp.ne.s32.totalorder %s250, %s252
    %p259 = scmp.eq.s32.totalorder %s22, 1
    %p260 = por %p258, %p259
    %p261 = scmp.ne.s32.totalorder %s252, %s253
    %p262 = scmp.eq.s32.totalorder %s22, 0
    %p263 = por %p261, %p262
    %p264 = scmp.ne.s32.totalorder %s252, %s253
    %p265 = scmp.eq.s32.totalorder %s23, 1
    %p266 = por %p264, %p265
    %p268 = scmp.ne.s32.totalorder %s253, %s267
    %p269 = scmp.eq.s32.totalorder %s23, 0
    %p270 = por %p268, %p269
    %s271 = ssub.s32 %s17, %s24
    %p272 = scmp.eq.s32.totalorder %s271, 0
    %s274 = sadd.s32 %s273, 1
    %s275 = scalar_select %p272, %s273, %s274
    %p278 = pneg %p272
    %p279 = scmp.eq.s32.totalorder %s17, 1
    %p280 = por %p278, %p279
    %p281 = scmp.ne.s32.totalorder %s273, %s276
    %p282 = scmp.eq.s32.totalorder %s17, 0
    %p283 = por %p281, %p282
    %p284 = scmp.ne.s32.totalorder %s273, %s276
    %p285 = scmp.eq.s32.totalorder %s22, 1
    %p286 = por %p284, %p285
    %p287 = scmp.ne.s32.totalorder %s276, %s277
    %p288 = scmp.eq.s32.totalorder %s22, 0
    %p289 = por %p287, %p288
    %p290 = scmp.ne.s32.totalorder %s276, %s277
    %p291 = scmp.eq.s32.totalorder %s23, 1
    %p292 = por %p290, %p291
    %p294 = scmp.ne.s32.totalorder %s277, %s293
    %p295 = scmp.eq.s32.totalorder %s23, 0
    %p296 = por %p294, %p295
    %p297 = scmp.le.s32.totalorder 1, %s17
    %p298 = scmp.lt.s32.totalorder %s17, 3
    %p299 = pnand %p297, %p298
    %p300 = pneg %p299
    // Predicated region
    $region9: #{key_network_forward.1} parent=5 // pred_check
      _
    $region10: #{key_network_forward.1} parent=5 // pred_check_branch
      %302 = sbr.rel (%p299) target = $region12
    $region11: #{key_network_forward.1} parent=5 // pred_region
      %s303 = ssub.s32 %s17, 1
      // Predicated region
      $region13: #{key_network_forward.1} parent=11 // pred_check
        %p304 = pneg %p116
      $region14: #{key_network_forward.1} parent=11 // pred_check_branch
        %306 = sbr.rel (%p304) target = $region16
      $region15: #{key_network_forward.1} parent=11 // pred_region
        _
      $region16: #{key_network_forward.1} parent=11 // pred_fallthru
        _
      // Predicated region
      $region17: #{key_network_forward.1} parent=11 // pred_check
        %p307 = pneg %p137
      $region18: #{key_network_forward.1} parent=11 // pred_check_branch
        %309 = sbr.rel (%p307) target = $region20
      $region19: #{key_network_forward.1} parent=11 // pred_region
        _
      $region20: #{key_network_forward.1} parent=11 // pred_fallthru
        _
      // Predicated region
      $region21: #{key_network_forward.1} parent=11 // pred_check
        %p310 = pneg %p158
      $region22: #{key_network_forward.1} parent=11 // pred_check_branch
        %312 = sbr.rel (%p310) target = $region24
      $region23: #{key_network_forward.1} parent=11 // pred_region
        _
      $region24: #{key_network_forward.1} parent=11 // pred_fallthru
        _
      // Predicated region
      $region25: #{key_network_forward.1} parent=11 // pred_check
        %p313 = pneg %p179
      $region26: #{key_network_forward.1} parent=11 // pred_check_branch
        %315 = sbr.rel (%p313) target = $region28
      $region27: #{key_network_forward.1} parent=11 // pred_region
        _
      $region28: #{key_network_forward.1} parent=11 // pred_fallthru
        _
      // Predicated region
      $region29: #{key_network_forward.1} parent=11 // pred_check
        %p316 = pneg %p200
      $region30: #{key_network_forward.1} parent=11 // pred_check_branch
        %318 = sbr.rel (%p316) target = $region32
      $region31: #{key_network_forward.1} parent=11 // pred_region
        _
      $region32: #{key_network_forward.1} parent=11 // pred_fallthru
        _
      // Predicated region
      $region33: #{key_network_forward.1} parent=11 // pred_check
        %p319 = pneg %p221
      $region34: #{key_network_forward.1} parent=11 // pred_check_branch
        %321 = sbr.rel (%p319) target = $region36
      $region35: #{key_network_forward.1} parent=11 // pred_region
        _
      $region36: #{key_network_forward.1} parent=11 // pred_fallthru
        _
      // Predicated region
      $region37: #{key_network_forward.1} parent=11 // pred_check
        %p322 = pneg %p242
      $region38: #{key_network_forward.1} parent=11 // pred_check_branch
        %324 = sbr.rel (%p322) target = $region40
      $region39: #{key_network_forward.1} parent=11 // pred_region
        _
      $region40: #{key_network_forward.1} parent=11 // pred_fallthru
        _
      // Predicated region
      $region41: #{key_network_forward.1} parent=11 // pred_check
        %p325 = pneg %p263
      $region42: #{key_network_forward.1} parent=11 // pred_check_branch
        %327 = sbr.rel (%p325) target = $region44
      $region43: #{key_network_forward.1} parent=11 // pred_region
        _
      $region44: #{key_network_forward.1} parent=11 // pred_fallthru
        _
    $region12: #{key_network_forward.1} parent=5 // pred_fallthru
      _
    %p328 = scmp.lt.s32.totalorder %s17, 2
    // Predicated region
    $region45: #{key_network_forward.1} parent=5 // pred_check
      %p329 = pneg %p328
    $region46: #{key_network_forward.1} parent=5 // pred_check_branch
      %331 = sbr.rel (%p329) target = $region48
    $region47: #{key_network_forward.1} parent=5 // pred_region
      // Predicated region
      $region49: #{key_network_forward.1} parent=47 // pred_check
        %p332 = pneg %p37
      $region50: #{key_network_forward.1} parent=47 // pred_check_branch
        %334 = sbr.rel (%p332) target = $region52
      $region51: #{key_network_forward.1} parent=47 // pred_region
        %s335 = smul.u32 19, %s17
        %p336 = scmp.lt.s32.totalorder %s335, 37
        %s337 = scalar_select %p336, %s335, 37
        %s338 = smul.addr %s337, 8
        %s339 = scalar_lea.vmem %s0, %s338
        %s340 = smul.u32 19, %s17
      $region52: #{key_network_forward.1} parent=47 // pred_fallthru
        _
      // Predicated region
      $region53: #{key_network_forward.1} parent=47 // pred_check
        %p341 = pneg %p63
      $region54: #{key_network_forward.1} parent=47 // pred_check_branch
        %343 = sbr.rel (%p341) target = $region56
      $region55: #{key_network_forward.1} parent=47 // pred_region
        %s344 = smul.u32 19, %s17
        %p345 = scmp.lt.s32.totalorder %s344, 37
        %s346 = scalar_select %p345, %s344, 37
        %s347 = smul.addr %s346, 8
        %s348 = scalar_lea.vmem %s1, %s347
        %s349 = smul.u32 19, %s17
      $region56: #{key_network_forward.1} parent=47 // pred_fallthru
        _
      // Predicated region
      $region57: #{key_network_forward.1} parent=47 // pred_check
        %p350 = pneg %p89
      $region58: #{key_network_forward.1} parent=47 // pred_check_branch
        %352 = sbr.rel (%p350) target = $region60
      $region59: #{key_network_forward.1} parent=47 // pred_region
        %s353 = smul.u32 19, %s17
        %p354 = scmp.lt.s32.totalorder %s353, 37
        %s355 = scalar_select %p354, %s353, 37
        %s356 = smul.addr %s355, 8
        %s357 = scalar_lea.vmem %s2, %s356
        %s358 = smul.u32 19, %s17
      $region60: #{key_network_forward.1} parent=47 // pred_fallthru
        _
    $region48: #{key_network_forward.1} parent=5 // pred_fallthru
      _
    %p359 = scmp.le.s32.totalorder 1, %s17
    %p360 = scmp.lt.s32.totalorder %s17, 3
    %p361 = pnand %p359, %p360
    %p362 = pneg %p361
    // Predicated region
    $region61: #{key_network_forward.1} parent=5 // pred_check
      _
    $region62: #{key_network_forward.1} parent=5 // pred_check_branch
      %364 = sbr.rel (%p361) target = $region64
    $region63: #{key_network_forward.1} parent=5 // pred_region
      %s365 = ssub.s32 %s17, 1
      %s366 = smul.u32 19, %s22
      %p367 = scmp.lt.s32.totalorder %s366, 37
      %s368 = scalar_select %p367, %s366, 37
      %s369 = smul.addr %s368, 8
      %s370 = scalar_lea.vmem %s0, %s369
      %p371 = pneg %p43
      %p372 = pneg %p40
      %s373 = smul.u32 19, %s22
      %p374 = scmp.lt.s32.totalorder %s373, 37
      %s375 = scalar_select %p374, %s373, 37
      %s376 = smul.addr %s375, 8
      %s377 = scalar_lea.vmem %s1, %s376
      %p378 = pneg %p69
      %p379 = pneg %p66
      %s380 = smul.u32 19, %s22
      %p381 = scmp.lt.s32.totalorder %s380, 37
      %s382 = scalar_select %p381, %s380, 37
      %s383 = smul.addr %s382, 8
      %s384 = scalar_lea.vmem %s2, %s383
      %p385 = pneg %p95
      %p386 = pneg %p92
      %p387 = pneg %p116
      %p388 = pneg %p113
      %p389 = pneg %p137
      %p390 = pneg %p134
      %p391 = pneg %p158
      %p392 = pneg %p155
      %p393 = pneg %p179
      %p394 = pneg %p176
      %p395 = pneg %p200
      %p396 = pneg %p197
      %p397 = pneg %p221
      %p398 = pneg %p218
      %p399 = pneg %p242
      %p400 = pneg %p239
      %p401 = pneg %p263
      %p402 = pneg %p260
      %p403 = pneg %p289
      %p404 = pneg %p286
      %s405 = smul.u32 19, %s22
      %p406 = scmp.lt.s32.totalorder %s405, 37
      %s407 = scalar_select %p406, %s405, 37
      %s408 = smul.addr %s407, 8
      %s409 = scalar_lea.vmem %s11, %s408
      %s410 = smul.u32 19, %s22
      %p411 = scmp.lt.s32.totalorder %s410, 37
      %s412 = scalar_select %p411, %s410, 37
      %s413 = smul.addr %s412, 8
      %s414 = scalar_lea.vmem %s0, %s413
      %s415 = smul.u32 19, %s22
      %s416 = smul.u32 19, %s22
      %p417 = scmp.lt.s32.totalorder %s416, 37
      %s418 = scalar_select %p417, %s416, 37
      %s419 = smul.addr %s418, 8
      %s420 = scalar_lea.vmem %s1, %s419
      %s421 = smul.u32 19, %s22
      %s422 = smul.u32 19, %s22
      %p423 = scmp.lt.s32.totalorder %s422, 37
      %s424 = scalar_select %p423, %s422, 37
      %s425 = smul.addr %s424, 8
      %s426 = scalar_lea.vmem %s2, %s425
      %s427 = smul.u32 19, %s22
      %s428 = smul.u32 19, %s22
      %p429 = scmp.lt.s32.totalorder %s428, 37
      %s430 = scalar_select %p429, %s428, 37
      %s431 = smul.addr %s430, 8
      %s432 = scalar_lea.vmem %s11, %s431
      %s433 = smul.u32 19, %s22
      %v435 = vld [vmem:[%s414] sm:$0xff]
      %v436 = vld [vmem:[%s414 + $0x8] sm:$0xff]
      %v437 = vld [vmem:[%s414 + $0x10] sm:$0xff]
      %v438 = vld [vmem:[%s414 + $0x18] sm:$0xff]
      %v439 = vld [vmem:[%s414 + $0x20] sm:$0xff]
      %v440 = vld [vmem:[%s414 + $0x28] sm:$0xff]
      %v441 = vld [vmem:[%s414 + $0x30] sm:$0xff]
      %v442 = vld [vmem:[%s414 + $0x38] sm:$0xff]
      %v443 = vld [vmem:[%s414 + $0x40] sm:$0xff]
      %v444 = vld [vmem:[%s414 + $0x48] sm:$0xff]
      %v445 = vld [vmem:[%s414 + $0x50] sm:$0xff]
      %v446 = vld [vmem:[%s414 + $0x58] sm:$0xff]
      %v447 = vld [vmem:[%s414 + $0x60] sm:$0xff]
      %v448 = vld [vmem:[%s414 + $0x68] sm:$0xff]
      %v449 = vld [vmem:[%s414 + $0x70] sm:$0xff]
      %v450 = vld [vmem:[%s414 + $0x78] sm:$0xff]
      %v451 = vld [vmem:[%s414 + $0x80] sm:$0xff]
      %v452 = vld [vmem:[%s414 + $0x88] sm:$0xff]
      %v453 = vld [vmem:[%s414 + $0x90] sm:$0xff]
      %v454 = vpack.c.bf16 %v436, %v435
      %v455 = vpack.c.bf16 %v438, %v437
      %v456 = vpack.c.bf16 %v440, %v439
      %v457 = vpack.c.bf16 %v442, %v441
      %v458 = vpack.c.bf16 %v444, %v443
      %v459 = vpack.c.bf16 %v446, %v445
      %v460 = vpack.c.bf16 %v448, %v447
      %v461 = vpack.c.bf16 %v450, %v449
      %v462 = vpack.c.bf16 %v452, %v451
      %v463 = vpack.c.bf16 %v453, %v453
      %v464 = vlaneseq
      %v465 = vand.u32 %v464, 127
      %v466 = vadd.s32 %v465, 128
      %v467 = vld [vmem:[%s420] sm:$0xff]
      %v468 = vld [vmem:[%s420 + $0x8] sm:$0xff]
      %v469 = vld [vmem:[%s420 + $0x10] sm:$0xff]
      %v470 = vld [vmem:[%s420 + $0x18] sm:$0xff]
      %v471 = vld [vmem:[%s420 + $0x20] sm:$0xff]
      %v472 = vld [vmem:[%s420 + $0x28] sm:$0xff]
      %v473 = vld [vmem:[%s420 + $0x30] sm:$0xff]
      %v474 = vld [vmem:[%s420 + $0x38] sm:$0xff]
      %v475 = vld [vmem:[%s420 + $0x40] sm:$0xff]
      %v476 = vld [vmem:[%s420 + $0x48] sm:$0xff]
      %v477 = vld [vmem:[%s420 + $0x50] sm:$0xff]
      %v478 = vld [vmem:[%s420 + $0x58] sm:$0xff]
      %v479 = vld [vmem:[%s420 + $0x60] sm:$0xff]
      %v480 = vld [vmem:[%s420 + $0x68] sm:$0xff]
      %v481 = vld [vmem:[%s420 + $0x70] sm:$0xff]
      %v482 = vld [vmem:[%s420 + $0x78] sm:$0xff]
      %v483 = vld [vmem:[%s420 + $0x80] sm:$0xff]
      %v484 = vld [vmem:[%s420 + $0x88] sm:$0xff]
      %v485 = vld [vmem:[%s420 + $0x90] sm:$0xff]
      %486 = vset.pattern.permute.xlu0 0
      %487 = vperm.xlu0 %486, %v467
      %v488 = vpop.permute.xlu0 %487
      %489 = vset.pattern.permute.xlu0 0
      %490 = vperm.xlu0 %489, %v468
      %v491 = vpop.permute.xlu0 %490
      %492 = vset.pattern.permute.xlu0 0
      %493 = vperm.xlu0 %492, %v469
      %v494 = vpop.permute.xlu0 %493
      %495 = vset.pattern.permute.xlu0 0
      %496 = vperm.xlu0 %495, %v470
      %v497 = vpop.permute.xlu0 %496
      %498 = vset.pattern.permute.xlu0 0
      %499 = vperm.xlu0 %498, %v471
      %v500 = vpop.permute.xlu0 %499
      %501 = vset.pattern.permute.xlu0 0
      %502 = vperm.xlu0 %501, %v472
      %v503 = vpop.permute.xlu0 %502
      %504 = vset.pattern.permute.xlu0 0
      %505 = vperm.xlu0 %504, %v473
      %v506 = vpop.permute.xlu0 %505
      %507 = vset.pattern.permute.xlu0 0
      %508 = vperm.xlu0 %507, %v474
      %v509 = vpop.permute.xlu0 %508
      %510 = vset.pattern.permute.xlu0 0
      %511 = vperm.xlu0 %510, %v475
      %v512 = vpop.permute.xlu0 %511
      %513 = vset.pattern.permute.xlu0 0
      %514 = vperm.xlu0 %513, %v476
      %v515 = vpop.permute.xlu0 %514
      %516 = vset.pattern.permute.xlu0 0
      %517 = vperm.xlu0 %516, %v477
      %v518 = vpop.permute.xlu0 %517
      %519 = vset.pattern.permute.xlu0 0
      %520 = vperm.xlu0 %519, %v478
      %v521 = vpop.permute.xlu0 %520
      %522 = vset.pattern.permute.xlu0 0
      %523 = vperm.xlu0 %522, %v479
      %v524 = vpop.permute.xlu0 %523
      %525 = vset.pattern.permute.xlu0 0
      %526 = vperm.xlu0 %525, %v480
      %v527 = vpop.permute.xlu0 %526
      %528 = vset.pattern.permute.xlu0 0
      %529 = vperm.xlu0 %528, %v481
      %v530 = vpop.permute.xlu0 %529
      %531 = vset.pattern.permute.xlu0 0
      %532 = vperm.xlu0 %531, %v482
      %v533 = vpop.permute.xlu0 %532
      %534 = vset.pattern.permute.xlu0 0
      %535 = vperm.xlu0 %534, %v483
      %v536 = vpop.permute.xlu0 %535
      %537 = vset.pattern.permute.xlu0 0
      %538 = vperm.xlu0 %537, %v484
      %v539 = vpop.permute.xlu0 %538
      %540 = vset.pattern.permute.xlu0 0
      %541 = vperm.xlu0 %540, %v485
      %v542 = vpop.permute.xlu0 %541
      %vm543 = vcmp.eq.s32.totalorder %v465, %v488
      %vm544 = vcmp.eq.s32.totalorder %v466, %v488
      %vm545 = vcmp.eq.s32.totalorder %v465, %v491
      %vm546 = vcmp.eq.s32.totalorder %v466, %v491
      %vm547 = vcmp.eq.s32.totalorder %v465, %v494
      %vm548 = vcmp.eq.s32.totalorder %v466, %v494
      %vm549 = vcmp.eq.s32.totalorder %v465, %v497
      %vm550 = vcmp.eq.s32.totalorder %v466, %v497
      %vm551 = vcmp.eq.s32.totalorder %v465, %v500
      %vm552 = vcmp.eq.s32.totalorder %v466, %v500
      %vm553 = vcmp.eq.s32.totalorder %v465, %v503
      %vm554 = vcmp.eq.s32.totalorder %v466, %v503
      %vm555 = vcmp.eq.s32.totalorder %v465, %v506
      %vm556 = vcmp.eq.s32.totalorder %v466, %v506
      %vm557 = vcmp.eq.s32.totalorder %v465, %v509
      %vm558 = vcmp.eq.s32.totalorder %v466, %v509
      %vm559 = vcmp.eq.s32.totalorder %v465, %v512
      %vm560 = vcmp.eq.s32.totalorder %v466, %v512
      %vm561 = vcmp.eq.s32.totalorder %v465, %v515
      %vm562 = vcmp.eq.s32.totalorder %v466, %v515
      %vm563 = vcmp.eq.s32.totalorder %v465, %v518
      %vm564 = vcmp.eq.s32.totalorder %v466, %v518
      %vm565 = vcmp.eq.s32.totalorder %v465, %v521
      %vm566 = vcmp.eq.s32.totalorder %v466, %v521
      %vm567 = vcmp.eq.s32.totalorder %v465, %v524
      %vm568 = vcmp.eq.s32.totalorder %v466, %v524
      %vm569 = vcmp.eq.s32.totalorder %v465, %v527
      %vm570 = vcmp.eq.s32.totalorder %v466, %v527
      %vm571 = vcmp.eq.s32.totalorder %v465, %v530
      %vm572 = vcmp.eq.s32.totalorder %v466, %v530
      %vm573 = vcmp.eq.s32.totalorder %v465, %v533
      %vm574 = vcmp.eq.s32.totalorder %v466, %v533
      %vm575 = vcmp.eq.s32.totalorder %v465, %v536
      %vm576 = vcmp.eq.s32.totalorder %v466, %v536
      %vm577 = vcmp.eq.s32.totalorder %v465, %v539
      %vm578 = vcmp.eq.s32.totalorder %v466, %v539
      %vm579 = vcmp.eq.s32.totalorder %v465, %v542
      %vm580 = vcmp.eq.s32.totalorder %v466, %v542
      %v581 = vsel %vm543, 1.0, 0.0
      %v582 = vsel %vm544, 1.0, 0.0
      %v583 = vsel %vm545, 1.0, 0.0
      %v584 = vsel %vm546, 1.0, 0.0
      %v585 = vsel %vm547, 1.0, 0.0
      %v586 = vsel %vm548, 1.0, 0.0
      %v587 = vsel %vm549, 1.0, 0.0
      %v588 = vsel %vm550, 1.0, 0.0
      %v589 = vsel %vm551, 1.0, 0.0
      %v590 = vsel %vm552, 1.0, 0.0
      %v591 = vsel %vm553, 1.0, 0.0
      %v592 = vsel %vm554, 1.0, 0.0
      %v593 = vsel %vm555, 1.0, 0.0
      %v594 = vsel %vm556, 1.0, 0.0
      %v595 = vsel %vm557, 1.0, 0.0
      %v596 = vsel %vm558, 1.0, 0.0
      %v597 = vsel %vm559, 1.0, 0.0
      %v598 = vsel %vm560, 1.0, 0.0
      %v599 = vsel %vm561, 1.0, 0.0
      %v600 = vsel %vm562, 1.0, 0.0
      %v601 = vsel %vm563, 1.0, 0.0
      %v602 = vsel %vm564, 1.0, 0.0
      %v603 = vsel %vm565, 1.0, 0.0
      %v604 = vsel %vm566, 1.0, 0.0
      %v605 = vsel %vm567, 1.0, 0.0
      %v606 = vsel %vm568, 1.0, 0.0
      %v607 = vsel %vm569, 1.0, 0.0
      %v608 = vsel %vm570, 1.0, 0.0
      %v609 = vsel %vm571, 1.0, 0.0
      %v610 = vsel %vm572, 1.0, 0.0
      %v611 = vsel %vm573, 1.0, 0.0
      %v612 = vsel %vm574, 1.0, 0.0
      %v613 = vsel %vm575, 1.0, 0.0
      %v614 = vsel %vm576, 1.0, 0.0
      %v615 = vsel %vm577, 1.0, 0.0
      %v616 = vsel %vm578, 1.0, 0.0
      %v617 = vsel %vm579, 1.0, 0.0
      %v618 = vsel %vm580, 1.0, 0.0
      %v619 = vpack.c.bf16 %v583, %v581
      %v620 = vpack.c.bf16 %v584, %v582
      %v621 = vpack.c.bf16 %v587, %v585
      %v622 = vpack.c.bf16 %v588, %v586
      %v623 = vpack.c.bf16 %v591, %v589
      %v624 = vpack.c.bf16 %v592, %v590
      %v625 = vpack.c.bf16 %v595, %v593
      %v626 = vpack.c.bf16 %v596, %v594
      %v627 = vpack.c.bf16 %v599, %v597
      %v628 = vpack.c.bf16 %v600, %v598
      %v629 = vpack.c.bf16 %v603, %v601
      %v630 = vpack.c.bf16 %v604, %v602
      %v631 = vpack.c.bf16 %v607, %v605
      %v632 = vpack.c.bf16 %v608, %v606
      %v633 = vpack.c.bf16 %v611, %v609
      %v634 = vpack.c.bf16 %v612, %v610
      %v635 = vpack.c.bf16 %v615, %v613
      %v636 = vpack.c.bf16 %v616, %v614
      %v637 = vpack.c.bf16 %v617, %v617
      %v638 = vpack.c.bf16 %v618, %v618
      %v639 = vld [vmem:[%s426] sm:$0xff]
      %v640 = vld [vmem:[%s426 + $0x8] sm:$0xff]
      %v641 = vld [vmem:[%s426 + $0x10] sm:$0xff]
      %v642 = vld [vmem:[%s426 + $0x18] sm:$0xff]
      %v643 = vld [vmem:[%s426 + $0x20] sm:$0xff]
      %v644 = vld [vmem:[%s426 + $0x28] sm:$0xff]
      %v645 = vld [vmem:[%s426 + $0x30] sm:$0xff]
      %v646 = vld [vmem:[%s426 + $0x38] sm:$0xff]
      %v647 = vld [vmem:[%s426 + $0x40] sm:$0xff]
      %v648 = vld [vmem:[%s426 + $0x48] sm:$0xff]
      %v649 = vld [vmem:[%s426 + $0x50] sm:$0xff]
      %v650 = vld [vmem:[%s426 + $0x58] sm:$0xff]
      %v651 = vld [vmem:[%s426 + $0x60] sm:$0xff]
      %v652 = vld [vmem:[%s426 + $0x68] sm:$0xff]
      %v653 = vld [vmem:[%s426 + $0x70] sm:$0xff]
      %v654 = vld [vmem:[%s426 + $0x78] sm:$0xff]
      %v655 = vld [vmem:[%s426 + $0x80] sm:$0xff]
      %v656 = vld [vmem:[%s426 + $0x88] sm:$0xff]
      %v657 = vld [vmem:[%s426 + $0x90] sm:$0xff]
      %658 = vset.pattern.permute.xlu0 0
      %659 = vperm.xlu0 %658, %v639
      %v660 = vpop.permute.xlu0 %659
      %661 = vset.pattern.permute.xlu0 0
      %662 = vperm.xlu0 %661, %v640
      %v663 = vpop.permute.xlu0 %662
      %664 = vset.pattern.permute.xlu0 0
      %665 = vperm.xlu0 %664, %v641
      %v666 = vpop.permute.xlu0 %665
      %667 = vset.pattern.permute.xlu0 0
      %668 = vperm.xlu0 %667, %v642
      %v669 = vpop.permute.xlu0 %668
      %670 = vset.pattern.permute.xlu0 0
      %671 = vperm.xlu0 %670, %v643
      %v672 = vpop.permute.xlu0 %671
      %673 = vset.pattern.permute.xlu0 0
      %674 = vperm.xlu0 %673, %v644
      %v675 = vpop.permute.xlu0 %674
      %676 = vset.pattern.permute.xlu0 0
      %677 = vperm.xlu0 %676, %v645
      %v678 = vpop.permute.xlu0 %677
      %679 = vset.pattern.permute.xlu0 0
      %680 = vperm.xlu0 %679, %v646
      %v681 = vpop.permute.xlu0 %680
      %682 = vset.pattern.permute.xlu0 0
      %683 = vperm.xlu0 %682, %v647
      %v684 = vpop.permute.xlu0 %683
      %685 = vset.pattern.permute.xlu0 0
      %686 = vperm.xlu0 %685, %v648
      %v687 = vpop.permute.xlu0 %686
      %688 = vset.pattern.permute.xlu0 0
      %689 = vperm.xlu0 %688, %v649
      %v690 = vpop.permute.xlu0 %689
      %691 = vset.pattern.permute.xlu0 0
      %692 = vperm.xlu0 %691, %v650
      %v693 = vpop.permute.xlu0 %692
      %694 = vset.pattern.permute.xlu0 0
      %695 = vperm.xlu0 %694, %v651
      %v696 = vpop.permute.xlu0 %695
      %697 = vset.pattern.permute.xlu0 0
      %698 = vperm.xlu0 %697, %v652
      %v699 = vpop.permute.xlu0 %698
      %700 = vset.pattern.permute.xlu0 0
      %701 = vperm.xlu0 %700, %v653
      %v702 = vpop.permute.xlu0 %701
      %703 = vset.pattern.permute.xlu0 0
      %704 = vperm.xlu0 %703, %v654
      %v705 = vpop.permute.xlu0 %704
      %706 = vset.pattern.permute.xlu0 0
      %707 = vperm.xlu0 %706, %v655
      %v708 = vpop.permute.xlu0 %707
      %709 = vset.pattern.permute.xlu0 0
      %710 = vperm.xlu0 %709, %v656
      %v711 = vpop.permute.xlu0 %710
      %712 = vset.pattern.permute.xlu0 0
      %713 = vperm.xlu0 %712, %v657
      %v714 = vpop.permute.xlu0 %713
      %vm715 = vcmp.eq.s32.totalorder %v465, %v660
      %vm716 = vcmp.eq.s32.totalorder %v465, %v663
      %vm717 = vcmp.eq.s32.totalorder %v465, %v666
      %vm718 = vcmp.eq.s32.totalorder %v465, %v669
      %vm719 = vcmp.eq.s32.totalorder %v465, %v672
      %vm720 = vcmp.eq.s32.totalorder %v465, %v675
      %vm721 = vcmp.eq.s32.totalorder %v465, %v678
      %vm722 = vcmp.eq.s32.totalorder %v465, %v681
      %vm723 = vcmp.eq.s32.totalorder %v465, %v684
      %vm724 = vcmp.eq.s32.totalorder %v465, %v687
      %vm725 = vcmp.eq.s32.totalorder %v465, %v690
      %vm726 = vcmp.eq.s32.totalorder %v465, %v693
      %vm727 = vcmp.eq.s32.totalorder %v465, %v696
      %vm728 = vcmp.eq.s32.totalorder %v465, %v699
      %vm729 = vcmp.eq.s32.totalorder %v465, %v702
      %vm730 = vcmp.eq.s32.totalorder %v465, %v705
      %vm731 = vcmp.eq.s32.totalorder %v465, %v708
      %vm732 = vcmp.eq.s32.totalorder %v465, %v711
      %vm733 = vcmp.eq.s32.totalorder %v465, %v714
      %v734 = vsel %vm715, 1.0, 0.0
      %v735 = vsel %vm716, 1.0, 0.0
      %v736 = vsel %vm717, 1.0, 0.0
      %v737 = vsel %vm718, 1.0, 0.0
      %v738 = vsel %vm719, 1.0, 0.0
      %v739 = vsel %vm720, 1.0, 0.0
      %v740 = vsel %vm721, 1.0, 0.0
      %v741 = vsel %vm722, 1.0, 0.0
      %v742 = vsel %vm723, 1.0, 0.0
      %v743 = vsel %vm724, 1.0, 0.0
      %v744 = vsel %vm725, 1.0, 0.0
      %v745 = vsel %vm726, 1.0, 0.0
      %v746 = vsel %vm727, 1.0, 0.0
      %v747 = vsel %vm728, 1.0, 0.0
      %v748 = vsel %vm729, 1.0, 0.0
      %v749 = vsel %vm730, 1.0, 0.0
      %v750 = vsel %vm731, 1.0, 0.0
      %v751 = vsel %vm732, 1.0, 0.0
      %v752 = vsel %vm733, 1.0, 0.0
      %v753 = vpack.c.bf16 %v735, %v734
      %v754 = vpack.c.bf16 %v737, %v736
      %v755 = vpack.c.bf16 %v739, %v738
      %v756 = vpack.c.bf16 %v741, %v740
      %v757 = vpack.c.bf16 %v743, %v742
      %v758 = vpack.c.bf16 %v745, %v744
      %v759 = vpack.c.bf16 %v747, %v746
      %v760 = vpack.c.bf16 %v749, %v748
      %v761 = vpack.c.bf16 %v751, %v750
      %v762 = vpack.c.bf16 %v752, %v752
      %v763 = vld [vmem:[%s3] sm:$0xff]
      %v764 = vld [vmem:[%s3 + $0x8] sm:$0xff]
      %v765 = vld [vmem:[%s3 + $0x10] sm:$0xff]
      %v766 = vld [vmem:[%s3 + $0x18] sm:$0xff]
      %v767 = vld [vmem:[%s3 + $0x20] sm:$0xff]
      %v768 = vld [vmem:[%s3 + $0x28] sm:$0xff]
      %v769 = vld [vmem:[%s3 + $0x30] sm:$0xff]
      %v770 = vld [vmem:[%s3 + $0x38] sm:$0xff]
      %v771 = vld [vmem:[%s4] sm:$0xff]
      %v772 = vld [vmem:[%s4 + $0x8] sm:$0xff]
      %v773 = vld [vmem:[%s4 + $0x10] sm:$0xff]
      %v774 = vld [vmem:[%s4 + $0x18] sm:$0xff]
      %v775 = vld [vmem:[%s4 + $0x20] sm:$0xff]
      %v776 = vld [vmem:[%s4 + $0x28] sm:$0xff]
      %v777 = vld [vmem:[%s4 + $0x30] sm:$0xff]
      %v778 = vld [vmem:[%s4 + $0x38] sm:$0xff]
      %v779 = vld [vmem:[%s4 + $0x40] sm:$0xff]
      %v780 = vld [vmem:[%s4 + $0x48] sm:$0xff]
      %v781 = vld [vmem:[%s4 + $0x50] sm:$0xff]
      %v782 = vld [vmem:[%s4 + $0x58] sm:$0xff]
      %v783 = vld [vmem:[%s4 + $0x60] sm:$0xff]
      %v784 = vld [vmem:[%s4 + $0x68] sm:$0xff]
      %v785 = vld [vmem:[%s4 + $0x70] sm:$0xff]
      %v786 = vld [vmem:[%s4 + $0x78] sm:$0xff]
      %v787 = vld [vmem:[%s4 + $0x80] sm:$0xff]
      %v788 = vld [vmem:[%s4 + $0x88] sm:$0xff]
      %v789 = vld [vmem:[%s4 + $0x90] sm:$0xff]
      %v790 = vld [vmem:[%s4 + $0x98] sm:$0xff]
      %v791 = vld [vmem:[%s4 + $0xa0] sm:$0xff]
      %v792 = vld [vmem:[%s4 + $0xa8] sm:$0xff]
      %v793 = vld [vmem:[%s4 + $0xb0] sm:$0xff]
      %v794 = vld [vmem:[%s4 + $0xb8] sm:$0xff]
      %v795 = vld [vmem:[%s4 + $0xc0] sm:$0xff]
      %v796 = vld [vmem:[%s4 + $0xc8] sm:$0xff]
      %v797 = vld [vmem:[%s4 + $0xd0] sm:$0xff]
      %v798 = vld [vmem:[%s4 + $0xd8] sm:$0xff]
      %v799 = vld [vmem:[%s4 + $0xe0] sm:$0xff]
      %v800 = vld [vmem:[%s4 + $0xe8] sm:$0xff]
      %v801 = vld [vmem:[%s4 + $0xf0] sm:$0xff]
      %v802 = vld [vmem:[%s4 + $0xf8] sm:$0xff]
      %v835 = vunpack.c.l.b16 %v771
      %v836 = vunpack.c.h.b16 %v771
      %v837 = vunpack.c.l.b16 %v772
      %v838 = vunpack.c.h.b16 %v772
      %v839 = vunpack.c.l.b16 %v773
      %v840 = vunpack.c.h.b16 %v773
      %v841 = vunpack.c.l.b16 %v774
      %v842 = vunpack.c.h.b16 %v774
      %v843 = vunpack.c.l.b16 %v775
      %v844 = vunpack.c.h.b16 %v775
      %v845 = vunpack.c.l.b16 %v776
      %v846 = vunpack.c.h.b16 %v776
      %v847 = vunpack.c.l.b16 %v777
      %v848 = vunpack.c.h.b16 %v777
      %v849 = vunpack.c.l.b16 %v778
      %v850 = vunpack.c.h.b16 %v778
      %v851 = vunpack.c.l.b16 %v779
      %v852 = vunpack.c.h.b16 %v779
      %v853 = vunpack.c.l.b16 %v780
      %v854 = vunpack.c.h.b16 %v780
      %v855 = vunpack.c.l.b16 %v781
      %v856 = vunpack.c.h.b16 %v781
      %v857 = vunpack.c.l.b16 %v782
      %v858 = vunpack.c.h.b16 %v782
      %v859 = vunpack.c.l.b16 %v783
      %v860 = vunpack.c.h.b16 %v783
      %v861 = vunpack.c.l.b16 %v784
      %v862 = vunpack.c.h.b16 %v784
      %v863 = vunpack.c.l.b16 %v785
      %v864 = vunpack.c.h.b16 %v785
      %v865 = vunpack.c.l.b16 %v786
      %v866 = vunpack.c.h.b16 %v786
      %v867 = vunpack.c.l.b16 %v787
      %v868 = vunpack.c.h.b16 %v787
      %v869 = vunpack.c.l.b16 %v788
      %v870 = vunpack.c.h.b16 %v788
      %v871 = vunpack.c.l.b16 %v789
      %v872 = vunpack.c.h.b16 %v789
      %v873 = vunpack.c.l.b16 %v790
      %v874 = vunpack.c.h.b16 %v790
      %v875 = vunpack.c.l.b16 %v791
      %v876 = vunpack.c.h.b16 %v791
      %v877 = vunpack.c.l.b16 %v792
      %v878 = vunpack.c.h.b16 %v792
      %v879 = vunpack.c.l.b16 %v793
      %v880 = vunpack.c.h.b16 %v793
      %v881 = vunpack.c.l.b16 %v794
      %v882 = vunpack.c.h.b16 %v794
      %v883 = vunpack.c.l.b16 %v795
      %v884 = vunpack.c.h.b16 %v795
      %v885 = vunpack.c.l.b16 %v796
      %v886 = vunpack.c.h.b16 %v796
      %v887 = vunpack.c.l.b16 %v797
      %v888 = vunpack.c.h.b16 %v797
      %v889 = vunpack.c.l.b16 %v798
      %v890 = vunpack.c.h.b16 %v798
      %v891 = vunpack.c.l.b16 %v799
      %v892 = vunpack.c.h.b16 %v799
      %v893 = vunpack.c.l.b16 %v800
      %v894 = vunpack.c.h.b16 %v800
      %v895 = vunpack.c.l.b16 %v801
      %v896 = vunpack.c.h.b16 %v801
      %v897 = vunpack.c.l.b16 %v802
      %v898 = vunpack.c.h.b16 %v802
      %v899 = vpack.c.b16 %v837, %v835
      %v900 = vpack.c.b16 %v838, %v836
      %v901 = vpack.c.b16 %v841, %v839
      %v902 = vpack.c.b16 %v842, %v840
      %v903 = vpack.c.b16 %v845, %v843
      %v904 = vpack.c.b16 %v846, %v844
      %v905 = vpack.c.b16 %v849, %v847
      %v906 = vpack.c.b16 %v850, %v848
      %v907 = vpack.c.b16 %v853, %v851
      %v908 = vpack.c.b16 %v854, %v852
      %v909 = vpack.c.b16 %v857, %v855
      %v910 = vpack.c.b16 %v858, %v856
      %v911 = vpack.c.b16 %v861, %v859
      %v912 = vpack.c.b16 %v862, %v860
      %v913 = vpack.c.b16 %v865, %v863
      %v914 = vpack.c.b16 %v866, %v864
      %v915 = vpack.c.b16 %v869, %v867
      %v916 = vpack.c.b16 %v870, %v868
      %v917 = vpack.c.b16 %v873, %v871
      %v918 = vpack.c.b16 %v874, %v872
      %v919 = vpack.c.b16 %v877, %v875
      %v920 = vpack.c.b16 %v878, %v876
      %v921 = vpack.c.b16 %v881, %v879
      %v922 = vpack.c.b16 %v882, %v880
      %v923 = vpack.c.b16 %v885, %v883
      %v924 = vpack.c.b16 %v886, %v884
      %v925 = vpack.c.b16 %v889, %v887
      %v926 = vpack.c.b16 %v890, %v888
      %v927 = vpack.c.b16 %v893, %v891
      %v928 = vpack.c.b16 %v894, %v892
      %v929 = vpack.c.b16 %v897, %v895
      %v930 = vpack.c.b16 %v898, %v896
      %963 = vmatpush.bf16.msra.mxu0 %v913
      %964 = vmatpush.bf16.msra.mxu0 %v911
      %965 = vmatpush.bf16.msra.mxu0 %v909
      %966 = vmatpush.bf16.msra.mxu0 %v907
      %967 = vmatpush.bf16.msra.mxu0 %v905
      %968 = vmatpush.bf16.msra.mxu0 %v903
      %969 = vmatpush.bf16.msra.mxu0 %v901
      %970 = vmatpush.bf16.msra.mxu0 %v899
      %971 = vmatmul.bf16.gmra.mxu0 %v619
      %v972 = vpop.f32.mrf.mxu0
      %v973 = vadd.f32 0.0, %v972
      %v974 = vpop.f32.mrf.mxu0
      %v975 = vadd.f32 0.0, %v974
      %976 = vmatmul.bf16.gmra.mxu0 %v621
      %v977 = vpop.f32.mrf.mxu0
      %v978 = vadd.f32 0.0, %v977
      %v979 = vpop.f32.mrf.mxu0
      %v980 = vadd.f32 0.0, %v979
      %981 = vmatmul.bf16.gmra.mxu0 %v623
      %v982 = vpop.f32.mrf.mxu0
      %v983 = vadd.f32 0.0, %v982
      %v984 = vpop.f32.mrf.mxu0
      %v985 = vadd.f32 0.0, %v984
      %986 = vmatmul.bf16.gmra.mxu0 %v625
      %v987 = vpop.f32.mrf.mxu0
      %v988 = vadd.f32 0.0, %v987
      %v989 = vpop.f32.mrf.mxu0
      %v990 = vadd.f32 0.0, %v989
      %991 = vmatmul.bf16.gmra.mxu0 %v627
      %v992 = vpop.f32.mrf.mxu0
      %v993 = vadd.f32 0.0, %v992
      %v994 = vpop.f32.mrf.mxu0
      %v995 = vadd.f32 0.0, %v994
      %996 = vmatmul.bf16.gmra.mxu0 %v629
      %v997 = vpop.f32.mrf.mxu0
      %v998 = vadd.f32 0.0, %v997
      %v999 = vpop.f32.mrf.mxu0
      %v1000 = vadd.f32 0.0, %v999
      %1001 = vmatmul.bf16.gmra.mxu0 %v631
      %v1002 = vpop.f32.mrf.mxu0
      %v1003 = vadd.f32 0.0, %v1002
      %v1004 = vpop.f32.mrf.mxu0
      %v1005 = vadd.f32 0.0, %v1004
      %1006 = vmatmul.bf16.gmra.mxu0 %v633
      %v1007 = vpop.f32.mrf.mxu0
      %v1008 = vadd.f32 0.0, %v1007
      %v1009 = vpop.f32.mrf.mxu0
      %v1010 = vadd.f32 0.0, %v1009
      %1011 = vmatmul.bf16.gmra.mxu0 %v635
      %v1012 = vpop.f32.mrf.mxu0
      %v1013 = vadd.f32 0.0, %v1012
      %v1014 = vpop.f32.mrf.mxu0
      %v1015 = vadd.f32 0.0, %v1014
      %1016 = vmatmul.bf16.gmra.mxu0 %v637
      %v1017 = vpop.f32.mrf.mxu0
      %v1018 = vadd.f32 0.0, %v1017
      %v1019 = vpop.f32.mrf.mxu0
      %1020 = vdwg.mxu0
      %1021 = vmatpush.bf16.msra.mxu0 %v929
      %1022 = vmatpush.bf16.msra.mxu0 %v927
      %1023 = vmatpush.bf16.msra.mxu0 %v925
      %1024 = vmatpush.bf16.msra.mxu0 %v923
      %1025 = vmatpush.bf16.msra.mxu0 %v921
      %1026 = vmatpush.bf16.msra.mxu0 %v919
      %1027 = vmatpush.bf16.msra.mxu0 %v917
      %1028 = vmatpush.bf16.msra.mxu0 %v915
      %1029 = vmatmul.bf16.gmra.mxu0 %v620
      %v1030 = vpop.f32.mrf.mxu0
      %v1031 = vadd.f32 %v973, %v1030
      %v1032 = vpop.f32.mrf.mxu0
      %v1033 = vadd.f32 %v975, %v1032
      %1034 = vmatmul.bf16.gmra.mxu0 %v622
      %v1035 = vpop.f32.mrf.mxu0
      %v1036 = vadd.f32 %v978, %v1035
      %v1037 = vpop.f32.mrf.mxu0
      %v1038 = vadd.f32 %v980, %v1037
      %1039 = vmatmul.bf16.gmra.mxu0 %v624
      %v1040 = vpop.f32.mrf.mxu0
      %v1041 = vadd.f32 %v983, %v1040
      %v1042 = vpop.f32.mrf.mxu0
      %v1043 = vadd.f32 %v985, %v1042
      %1044 = vmatmul.bf16.gmra.mxu0 %v626
      %v1045 = vpop.f32.mrf.mxu0
      %v1046 = vadd.f32 %v988, %v1045
      %v1047 = vpop.f32.mrf.mxu0
      %v1048 = vadd.f32 %v990, %v1047
      %1049 = vmatmul.bf16.gmra.mxu0 %v628
      %v1050 = vpop.f32.mrf.mxu0
      %v1051 = vadd.f32 %v993, %v1050
      %v1052 = vpop.f32.mrf.mxu0
      %v1053 = vadd.f32 %v995, %v1052
      %1054 = vmatmul.bf16.gmra.mxu0 %v630
      %v1055 = vpop.f32.mrf.mxu0
      %v1056 = vadd.f32 %v998, %v1055
      %v1057 = vpop.f32.mrf.mxu0
      %v1058 = vadd.f32 %v1000, %v1057
      %1059 = vmatmul.bf16.gmra.mxu0 %v632
      %v1060 = vpop.f32.mrf.mxu0
      %v1061 = vadd.f32 %v1003, %v1060
      %v1062 = vpop.f32.mrf.mxu0
      %v1063 = vadd.f32 %v1005, %v1062
      %1064 = vmatmul.bf16.gmra.mxu0 %v634
      %v1065 = vpop.f32.mrf.mxu0
      %v1066 = vadd.f32 %v1008, %v1065
      %v1067 = vpop.f32.mrf.mxu0
      %v1068 = vadd.f32 %v1010, %v1067
      %1069 = vmatmul.bf16.gmra.mxu0 %v636
      %v1070 = vpop.f32.mrf.mxu0
      %v1071 = vadd.f32 %v1013, %v1070
      %v1072 = vpop.f32.mrf.mxu0
      %v1073 = vadd.f32 %v1015, %v1072
      %1074 = vmatmul.bf16.gmra.mxu0 %v638
      %v1075 = vpop.f32.mrf.mxu0
      %v1076 = vadd.f32 %v1018, %v1075
      %v1077 = vpop.f32.mrf.mxu0
      %1078 = vdwg.mxu0
      %1079 = vmatpush.bf16.msra.mxu0 %v914
      %1080 = vmatpush.bf16.msra.mxu0 %v912
      %1081 = vmatpush.bf16.msra.mxu0 %v910
      %1082 = vmatpush.bf16.msra.mxu0 %v908
      %1083 = vmatpush.bf16.msra.mxu0 %v906
      %1084 = vmatpush.bf16.msra.mxu0 %v904
      %1085 = vmatpush.bf16.msra.mxu0 %v902
      %1086 = vmatpush.bf16.msra.mxu0 %v900
      %1087 = vmatmul.bf16.gmra.mxu0 %v619
      %v1088 = vpop.f32.mrf.mxu0
      %v1089 = vadd.f32 0.0, %v1088
      %v1090 = vpop.f32.mrf.mxu0
      %v1091 = vadd.f32 0.0, %v1090
      %1092 = vmatmul.bf16.gmra.mxu0 %v621
      %v1093 = vpop.f32.mrf.mxu0
      %v1094 = vadd.f32 0.0, %v1093
      %v1095 = vpop.f32.mrf.mxu0
      %v1096 = vadd.f32 0.0, %v1095
      %1097 = vmatmul.bf16.gmra.mxu0 %v623
      %v1098 = vpop.f32.mrf.mxu0
      %v1099 = vadd.f32 0.0, %v1098
      %v1100 = vpop.f32.mrf.mxu0
      %v1101 = vadd.f32 0.0, %v1100
      %1102 = vmatmul.bf16.gmra.mxu0 %v625
      %v1103 = vpop.f32.mrf.mxu0
      %v1104 = vadd.f32 0.0, %v1103
      %v1105 = vpop.f32.mrf.mxu0
      %v1106 = vadd.f32 0.0, %v1105
      %1107 = vmatmul.bf16.gmra.mxu0 %v627
      %v1108 = vpop.f32.mrf.mxu0
      %v1109 = vadd.f32 0.0, %v1108
      %v1110 = vpop.f32.mrf.mxu0
      %v1111 = vadd.f32 0.0, %v1110
      %1112 = vmatmul.bf16.gmra.mxu0 %v629
      %v1113 = vpop.f32.mrf.mxu0
      %v1114 = vadd.f32 0.0, %v1113
      %v1115 = vpop.f32.mrf.mxu0
      %v1116 = vadd.f32 0.0, %v1115
      %1117 = vmatmul.bf16.gmra.mxu0 %v631
      %v1118 = vpop.f32.mrf.mxu0
      %v1119 = vadd.f32 0.0, %v1118
      %v1120 = vpop.f32.mrf.mxu0
      %v1121 = vadd.f32 0.0, %v1120
      %1122 = vmatmul.bf16.gmra.mxu0 %v633
      %v1123 = vpop.f32.mrf.mxu0
      %v1124 = vadd.f32 0.0, %v1123
      %v1125 = vpop.f32.mrf.mxu0
      %v1126 = vadd.f32 0.0, %v1125
      %1127 = vmatmul.bf16.gmra.mxu0 %v635
      %v1128 = vpop.f32.mrf.mxu0
      %v1129 = vadd.f32 0.0, %v1128
      %v1130 = vpop.f32.mrf.mxu0
      %v1131 = vadd.f32 0.0, %v1130
      %1132 = vmatmul.bf16.gmra.mxu0 %v637
      %v1133 = vpop.f32.mrf.mxu0
      %v1134 = vadd.f32 0.0, %v1133
      %v1135 = vpop.f32.mrf.mxu0
      %1136 = vdwg.mxu0
      %1137 = vmatpush.bf16.msra.mxu0 %v930
      %1138 = vmatpush.bf16.msra.mxu0 %v928
      %1139 = vmatpush.bf16.msra.mxu0 %v926
      %1140 = vmatpush.bf16.msra.mxu0 %v924
      %1141 = vmatpush.bf16.msra.mxu0 %v922
      %1142 = vmatpush.bf16.msra.mxu0 %v920
      %1143 = vmatpush.bf16.msra.mxu0 %v918
      %1144 = vmatpush.bf16.msra.mxu0 %v916
      %1145 = vmatmul.bf16.gmra.mxu0 %v620
      %v1146 = vpop.f32.mrf.mxu0
      %v1147 = vadd.f32 %v1089, %v1146
      %v1148 = vpop.f32.mrf.mxu0
      %v1149 = vadd.f32 %v1091, %v1148
      %1150 = vmatmul.bf16.gmra.mxu0 %v622
      %v1151 = vpop.f32.mrf.mxu0
      %v1152 = vadd.f32 %v1094, %v1151
      %v1153 = vpop.f32.mrf.mxu0
      %v1154 = vadd.f32 %v1096, %v1153
      %1155 = vmatmul.bf16.gmra.mxu0 %v624
      %v1156 = vpop.f32.mrf.mxu0
      %v1157 = vadd.f32 %v1099, %v1156
      %v1158 = vpop.f32.mrf.mxu0
      %v1159 = vadd.f32 %v1101, %v1158
      %1160 = vmatmul.bf16.gmra.mxu0 %v626
      %v1161 = vpop.f32.mrf.mxu0
      %v1162 = vadd.f32 %v1104, %v1161
      %v1163 = vpop.f32.mrf.mxu0
      %v1164 = vadd.f32 %v1106, %v1163
      %1165 = vmatmul.bf16.gmra.mxu0 %v628
      %v1166 = vpop.f32.mrf.mxu0
      %v1167 = vadd.f32 %v1109, %v1166
      %v1168 = vpop.f32.mrf.mxu0
      %v1169 = vadd.f32 %v1111, %v1168
      %1170 = vmatmul.bf16.gmra.mxu0 %v630
      %v1171 = vpop.f32.mrf.mxu0
      %v1172 = vadd.f32 %v1114, %v1171
      %v1173 = vpop.f32.mrf.mxu0
      %v1174 = vadd.f32 %v1116, %v1173
      %1175 = vmatmul.bf16.gmra.mxu0 %v632
      %v1176 = vpop.f32.mrf.mxu0
      %v1177 = vadd.f32 %v1119, %v1176
      %v1178 = vpop.f32.mrf.mxu0
      %v1179 = vadd.f32 %v1121, %v1178
      %1180 = vmatmul.bf16.gmra.mxu0 %v634
      %v1181 = vpop.f32.mrf.mxu0
      %v1182 = vadd.f32 %v1124, %v1181
      %v1183 = vpop.f32.mrf.mxu0
      %v1184 = vadd.f32 %v1126, %v1183
      %1185 = vmatmul.bf16.gmra.mxu0 %v636
      %v1186 = vpop.f32.mrf.mxu0
      %v1187 = vadd.f32 %v1129, %v1186
      %v1188 = vpop.f32.mrf.mxu0
      %v1189 = vadd.f32 %v1131, %v1188
      %1190 = vmatmul.bf16.gmra.mxu0 %v638
      %v1191 = vpop.f32.mrf.mxu0
      %v1192 = vadd.f32 %v1134, %v1191
      %v1193 = vpop.f32.mrf.mxu0
      %1194 = vdwg.mxu0
      %v1203 = vunpack.c.l.b16 %v763
      %v1204 = vunpack.c.h.b16 %v763
      %v1205 = vunpack.c.l.b16 %v764
      %v1206 = vunpack.c.h.b16 %v764
      %v1207 = vunpack.c.l.b16 %v765
      %v1208 = vunpack.c.h.b16 %v765
      %v1209 = vunpack.c.l.b16 %v766
      %v1210 = vunpack.c.h.b16 %v766
      %v1211 = vunpack.c.l.b16 %v767
      %v1212 = vunpack.c.h.b16 %v767
      %v1213 = vunpack.c.l.b16 %v768
      %v1214 = vunpack.c.h.b16 %v768
      %v1215 = vunpack.c.l.b16 %v769
      %v1216 = vunpack.c.h.b16 %v769
      %v1217 = vunpack.c.l.b16 %v770
      %v1218 = vunpack.c.h.b16 %v770
      %v1219 = vpack.c.b16 %v1205, %v1203
      %v1220 = vpack.c.b16 %v1206, %v1204
      %v1221 = vpack.c.b16 %v1209, %v1207
      %v1222 = vpack.c.b16 %v1210, %v1208
      %v1223 = vpack.c.b16 %v1213, %v1211
      %v1224 = vpack.c.b16 %v1214, %v1212
      %v1225 = vpack.c.b16 %v1217, %v1215
      %v1226 = vpack.c.b16 %v1218, %v1216
      %vm1235 = vcmask 523264
      %v1237 = vsel %vm1235, %v454, 0
      %v1240 = vsel %vm1235, %v455, 0
      %v1243 = vsel %vm1235, %v456, 0
      %v1246 = vsel %vm1235, %v457, 0
      %v1249 = vsel %vm1235, %v458, 0
      %v1252 = vsel %vm1235, %v459, 0
      %v1255 = vsel %vm1235, %v460, 0
      %v1258 = vsel %vm1235, %v461, 0
      %v1261 = vsel %vm1235, %v462, 0
      %v1264 = vsel %vm1235, %v463, 0
      %1266 = vmatpush.bf16.msra.mxu0 0
      %1267 = vmatpush.bf16.msra.mxu0 0
      %1268 = vmatpush.bf16.msra.mxu0 0
      %1269 = vmatpush.bf16.msra.mxu0 0
      %1270 = vmatpush.bf16.msra.mxu0 %v1225
      %1271 = vmatpush.bf16.msra.mxu0 %v1223
      %1272 = vmatpush.bf16.msra.mxu0 %v1221
      %1273 = vmatpush.bf16.msra.mxu0 %v1219
      %1274 = vmatmul.bf16.gmra.mxu0 %v1237
      %v1275 = vpop.f32.mrf.mxu0
      %v1276 = vadd.f32 %v1031, %v1275
      %v1277 = vpop.f32.mrf.mxu0
      %v1278 = vadd.f32 %v1033, %v1277
      %1279 = vmatmul.bf16.gmra.mxu0 %v1240
      %v1280 = vpop.f32.mrf.mxu0
      %v1281 = vadd.f32 %v1036, %v1280
      %v1282 = vpop.f32.mrf.mxu0
      %v1283 = vadd.f32 %v1038, %v1282
      %1284 = vmatmul.bf16.gmra.mxu0 %v1243
      %v1285 = vpop.f32.mrf.mxu0
      %v1286 = vadd.f32 %v1041, %v1285
      %v1287 = vpop.f32.mrf.mxu0
      %v1288 = vadd.f32 %v1043, %v1287
      %1289 = vmatmul.bf16.gmra.mxu0 %v1246
      %v1290 = vpop.f32.mrf.mxu0
      %v1291 = vadd.f32 %v1046, %v1290
      %v1292 = vpop.f32.mrf.mxu0
      %v1293 = vadd.f32 %v1048, %v1292
      %1294 = vmatmul.bf16.gmra.mxu0 %v1249
      %v1295 = vpop.f32.mrf.mxu0
      %v1296 = vadd.f32 %v1051, %v1295
      %v1297 = vpop.f32.mrf.mxu0
      %v1298 = vadd.f32 %v1053, %v1297
      %1299 = vmatmul.bf16.gmra.mxu0 %v1252
      %v1300 = vpop.f32.mrf.mxu0
      %v1301 = vadd.f32 %v1056, %v1300
      %v1302 = vpop.f32.mrf.mxu0
      %v1303 = vadd.f32 %v1058, %v1302
      %1304 = vmatmul.bf16.gmra.mxu0 %v1255
      %v1305 = vpop.f32.mrf.mxu0
      %v1306 = vadd.f32 %v1061, %v1305
      %v1307 = vpop.f32.mrf.mxu0
      %v1308 = vadd.f32 %v1063, %v1307
      %1309 = vmatmul.bf16.gmra.mxu0 %v1258
      %v1310 = vpop.f32.mrf.mxu0
      %v1311 = vadd.f32 %v1066, %v1310
      %v1312 = vpop.f32.mrf.mxu0
      %v1313 = vadd.f32 %v1068, %v1312
      %1314 = vmatmul.bf16.gmra.mxu0 %v1261
      %v1315 = vpop.f32.mrf.mxu0
      %v1316 = vadd.f32 %v1071, %v1315
      %v1317 = vpop.f32.mrf.mxu0
      %v1318 = vadd.f32 %v1073, %v1317
      %1319 = vmatmul.bf16.gmra.mxu0 %v1264
      %v1320 = vpop.f32.mrf.mxu0
      %v1321 = vadd.f32 %v1076, %v1320
      %v1322 = vpop.f32.mrf.mxu0
      %1323 = vdwg.mxu0
      %1324 = vmatpush.bf16.msra.mxu0 0
      %1325 = vmatpush.bf16.msra.mxu0 0
      %1326 = vmatpush.bf16.msra.mxu0 0
      %1327 = vmatpush.bf16.msra.mxu0 0
      %1328 = vmatpush.bf16.msra.mxu0 %v1226
      %1329 = vmatpush.bf16.msra.mxu0 %v1224
      %1330 = vmatpush.bf16.msra.mxu0 %v1222
      %1331 = vmatpush.bf16.msra.mxu0 %v1220
      %1332 = vmatmul.bf16.gmra.mxu0 %v1237
      %v1333 = vpop.f32.mrf.mxu0
      %v1334 = vadd.f32 %v1147, %v1333
      %v1335 = vpop.f32.mrf.mxu0
      %v1336 = vadd.f32 %v1149, %v1335
      %1337 = vmatmul.bf16.gmra.mxu0 %v1240
      %v1338 = vpop.f32.mrf.mxu0
      %v1339 = vadd.f32 %v1152, %v1338
      %v1340 = vpop.f32.mrf.mxu0
      %v1341 = vadd.f32 %v1154, %v1340
      %1342 = vmatmul.bf16.gmra.mxu0 %v1243
      %v1343 = vpop.f32.mrf.mxu0
      %v1344 = vadd.f32 %v1157, %v1343
      %v1345 = vpop.f32.mrf.mxu0
      %v1346 = vadd.f32 %v1159, %v1345
      %1347 = vmatmul.bf16.gmra.mxu0 %v1246
      %v1348 = vpop.f32.mrf.mxu0
      %v1349 = vadd.f32 %v1162, %v1348
      %v1350 = vpop.f32.mrf.mxu0
      %v1351 = vadd.f32 %v1164, %v1350
      %1352 = vmatmul.bf16.gmra.mxu0 %v1249
      %v1353 = vpop.f32.mrf.mxu0
      %v1354 = vadd.f32 %v1167, %v1353
      %v1355 = vpop.f32.mrf.mxu0
      %v1356 = vadd.f32 %v1169, %v1355
      %1357 = vmatmul.bf16.gmra.mxu0 %v1252
      %v1358 = vpop.f32.mrf.mxu0
      %v1359 = vadd.f32 %v1172, %v1358
      %v1360 = vpop.f32.mrf.mxu0
      %v1361 = vadd.f32 %v1174, %v1360
      %1362 = vmatmul.bf16.gmra.mxu0 %v1255
      %v1363 = vpop.f32.mrf.mxu0
      %v1364 = vadd.f32 %v1177, %v1363
      %v1365 = vpop.f32.mrf.mxu0
      %v1366 = vadd.f32 %v1179, %v1365
      %1367 = vmatmul.bf16.gmra.mxu0 %v1258
      %v1368 = vpop.f32.mrf.mxu0
      %v1369 = vadd.f32 %v1182, %v1368
      %v1370 = vpop.f32.mrf.mxu0
      %v1371 = vadd.f32 %v1184, %v1370
      %1372 = vmatmul.bf16.gmra.mxu0 %v1261
      %v1373 = vpop.f32.mrf.mxu0
      %v1374 = vadd.f32 %v1187, %v1373
      %v1375 = vpop.f32.mrf.mxu0
      %v1376 = vadd.f32 %v1189, %v1375
      %1377 = vmatmul.bf16.gmra.mxu0 %v1264
      %v1378 = vpop.f32.mrf.mxu0
      %v1379 = vadd.f32 %v1192, %v1378
      %v1380 = vpop.f32.mrf.mxu0
      %1381 = vdwg.mxu0
      %v1382 = vld [vmem:[%s5] sm:$0xff]
      %v1383 = vld [vmem:[%s5 + $0x8] sm:$0xff]
      %v1384 = vld [vmem:[%s5 + $0x10] sm:$0xff]
      %v1385 = vld [vmem:[%s5 + $0x18] sm:$0xff]
      %v1386 = vld [vmem:[%s5 + $0x20] sm:$0xff]
      %v1387 = vld [vmem:[%s5 + $0x28] sm:$0xff]
      %v1388 = vld [vmem:[%s5 + $0x30] sm:$0xff]
      %v1389 = vld [vmem:[%s5 + $0x38] sm:$0xff]
      %v1390 = vld [vmem:[%s5 + $0x40] sm:$0xff]
      %v1391 = vld [vmem:[%s5 + $0x48] sm:$0xff]
      %v1392 = vld [vmem:[%s5 + $0x50] sm:$0xff]
      %v1393 = vld [vmem:[%s5 + $0x58] sm:$0xff]
      %v1394 = vld [vmem:[%s5 + $0x60] sm:$0xff]
      %v1395 = vld [vmem:[%s5 + $0x68] sm:$0xff]
      %v1396 = vld [vmem:[%s5 + $0x70] sm:$0xff]
      %v1397 = vld [vmem:[%s5 + $0x78] sm:$0xff]
      %v1414 = vunpack.c.l.b16 %v1382
      %v1415 = vunpack.c.h.b16 %v1382
      %v1416 = vunpack.c.l.b16 %v1383
      %v1417 = vunpack.c.h.b16 %v1383
      %v1418 = vunpack.c.l.b16 %v1384
      %v1419 = vunpack.c.h.b16 %v1384
      %v1420 = vunpack.c.l.b16 %v1385
      %v1421 = vunpack.c.h.b16 %v1385
      %v1422 = vunpack.c.l.b16 %v1386
      %v1423 = vunpack.c.h.b16 %v1386
      %v1424 = vunpack.c.l.b16 %v1387
      %v1425 = vunpack.c.h.b16 %v1387
      %v1426 = vunpack.c.l.b16 %v1388
      %v1427 = vunpack.c.h.b16 %v1388
      %v1428 = vunpack.c.l.b16 %v1389
      %v1429 = vunpack.c.h.b16 %v1389
      %v1430 = vunpack.c.l.b16 %v1390
      %v1431 = vunpack.c.h.b16 %v1390
      %v1432 = vunpack.c.l.b16 %v1391
      %v1433 = vunpack.c.h.b16 %v1391
      %v1434 = vunpack.c.l.b16 %v1392
      %v1435 = vunpack.c.h.b16 %v1392
      %v1436 = vunpack.c.l.b16 %v1393
      %v1437 = vunpack.c.h.b16 %v1393
      %v1438 = vunpack.c.l.b16 %v1394
      %v1439 = vunpack.c.h.b16 %v1394
      %v1440 = vunpack.c.l.b16 %v1395
      %v1441 = vunpack.c.h.b16 %v1395
      %v1442 = vunpack.c.l.b16 %v1396
      %v1443 = vunpack.c.h.b16 %v1396
      %v1444 = vunpack.c.l.b16 %v1397
      %v1445 = vunpack.c.h.b16 %v1397
      %v1446 = vpack.c.b16 %v1416, %v1414
      %v1447 = vpack.c.b16 %v1417, %v1415
      %v1448 = vpack.c.b16 %v1420, %v1418
      %v1449 = vpack.c.b16 %v1421, %v1419
      %v1450 = vpack.c.b16 %v1424, %v1422
      %v1451 = vpack.c.b16 %v1425, %v1423
      %v1452 = vpack.c.b16 %v1428, %v1426
      %v1453 = vpack.c.b16 %v1429, %v1427
      %v1454 = vpack.c.b16 %v1432, %v1430
      %v1455 = vpack.c.b16 %v1433, %v1431
      %v1456 = vpack.c.b16 %v1436, %v1434
      %v1457 = vpack.c.b16 %v1437, %v1435
      %v1458 = vpack.c.b16 %v1440, %v1438
      %v1459 = vpack.c.b16 %v1441, %v1439
      %v1460 = vpack.c.b16 %v1444, %v1442
      %v1461 = vpack.c.b16 %v1445, %v1443
      %1478 = vmatpush.bf16.msra.mxu0 %v1460
      %1479 = vmatpush.bf16.msra.mxu0 %v1458
      %1480 = vmatpush.bf16.msra.mxu0 %v1456
      %1481 = vmatpush.bf16.msra.mxu0 %v1454
      %1482 = vmatpush.bf16.msra.mxu0 %v1452
      %1483 = vmatpush.bf16.msra.mxu0 %v1450
      %1484 = vmatpush.bf16.msra.mxu0 %v1448
      %1485 = vmatpush.bf16.msra.mxu0 %v1446
      %1486 = vmatmul.bf16.gmra.mxu0 %v753
      %v1487 = vpop.f32.mrf.mxu0
      %v1488 = vadd.f32 0.0, %v1487
      %v1489 = vpop.f32.mrf.mxu0
      %v1490 = vadd.f32 0.0, %v1489
      %1491 = vmatmul.bf16.gmra.mxu0 %v754
      %v1492 = vpop.f32.mrf.mxu0
      %v1493 = vadd.f32 0.0, %v1492
      %v1494 = vpop.f32.mrf.mxu0
      %v1495 = vadd.f32 0.0, %v1494
      %1496 = vmatmul.bf16.gmra.mxu0 %v755
      %v1497 = vpop.f32.mrf.mxu0
      %v1498 = vadd.f32 0.0, %v1497
      %v1499 = vpop.f32.mrf.mxu0
      %v1500 = vadd.f32 0.0, %v1499
      %1501 = vmatmul.bf16.gmra.mxu0 %v756
      %v1502 = vpop.f32.mrf.mxu0
      %v1503 = vadd.f32 0.0, %v1502
      %v1504 = vpop.f32.mrf.mxu0
      %v1505 = vadd.f32 0.0, %v1504
      %1506 = vmatmul.bf16.gmra.mxu0 %v757
      %v1507 = vpop.f32.mrf.mxu0
      %v1508 = vadd.f32 0.0, %v1507
      %v1509 = vpop.f32.mrf.mxu0
      %v1510 = vadd.f32 0.0, %v1509
      %1511 = vmatmul.bf16.gmra.mxu0 %v758
      %v1512 = vpop.f32.mrf.mxu0
      %v1513 = vadd.f32 0.0, %v1512
      %v1514 = vpop.f32.mrf.mxu0
      %v1515 = vadd.f32 0.0, %v1514
      %1516 = vmatmul.bf16.gmra.mxu0 %v759
      %v1517 = vpop.f32.mrf.mxu0
      %v1518 = vadd.f32 0.0, %v1517
      %v1519 = vpop.f32.mrf.mxu0
      %v1520 = vadd.f32 0.0, %v1519
      %1521 = vmatmul.bf16.gmra.mxu0 %v760
      %v1522 = vpop.f32.mrf.mxu0
      %v1523 = vadd.f32 0.0, %v1522
      %v1524 = vpop.f32.mrf.mxu0
      %v1525 = vadd.f32 0.0, %v1524
      %1526 = vmatmul.bf16.gmra.mxu0 %v761
      %v1527 = vpop.f32.mrf.mxu0
      %v1528 = vadd.f32 0.0, %v1527
      %v1529 = vpop.f32.mrf.mxu0
      %v1530 = vadd.f32 0.0, %v1529
      %1531 = vmatmul.bf16.gmra.mxu0 %v762
      %v1532 = vpop.f32.mrf.mxu0
      %v1533 = vadd.f32 0.0, %v1532
      %v1534 = vpop.f32.mrf.mxu0
      %1535 = vdwg.mxu0
      %1536 = vmatpush.bf16.msra.mxu0 %v1461
      %1537 = vmatpush.bf16.msra.mxu0 %v1459
      %1538 = vmatpush.bf16.msra.mxu0 %v1457
      %1539 = vmatpush.bf16.msra.mxu0 %v1455
      %1540 = vmatpush.bf16.msra.mxu0 %v1453
      %1541 = vmatpush.bf16.msra.mxu0 %v1451
      %1542 = vmatpush.bf16.msra.mxu0 %v1449
      %1543 = vmatpush.bf16.msra.mxu0 %v1447
      %1544 = vmatmul.bf16.gmra.mxu0 %v753
      %v1545 = vpop.f32.mrf.mxu0
      %v1546 = vadd.f32 0.0, %v1545
      %v1547 = vpop.f32.mrf.mxu0
      %v1548 = vadd.f32 0.0, %v1547
      %1549 = vmatmul.bf16.gmra.mxu0 %v754
      %v1550 = vpop.f32.mrf.mxu0
      %v1551 = vadd.f32 0.0, %v1550
      %v1552 = vpop.f32.mrf.mxu0
      %v1553 = vadd.f32 0.0, %v1552
      %1554 = vmatmul.bf16.gmra.mxu0 %v755
      %v1555 = vpop.f32.mrf.mxu0
      %v1556 = vadd.f32 0.0, %v1555
      %v1557 = vpop.f32.mrf.mxu0
      %v1558 = vadd.f32 0.0, %v1557
      %1559 = vmatmul.bf16.gmra.mxu0 %v756
      %v1560 = vpop.f32.mrf.mxu0
      %v1561 = vadd.f32 0.0, %v1560
      %v1562 = vpop.f32.mrf.mxu0
      %v1563 = vadd.f32 0.0, %v1562
      %1564 = vmatmul.bf16.gmra.mxu0 %v757
      %v1565 = vpop.f32.mrf.mxu0
      %v1566 = vadd.f32 0.0, %v1565
      %v1567 = vpop.f32.mrf.mxu0
      %v1568 = vadd.f32 0.0, %v1567
      %1569 = vmatmul.bf16.gmra.mxu0 %v758
      %v1570 = vpop.f32.mrf.mxu0
      %v1571 = vadd.f32 0.0, %v1570
      %v1572 = vpop.f32.mrf.mxu0
      %v1573 = vadd.f32 0.0, %v1572
      %1574 = vmatmul.bf16.gmra.mxu0 %v759
      %v1575 = vpop.f32.mrf.mxu0
      %v1576 = vadd.f32 0.0, %v1575
      %v1577 = vpop.f32.mrf.mxu0
      %v1578 = vadd.f32 0.0, %v1577
      %1579 = vmatmul.bf16.gmra.mxu0 %v760
      %v1580 = vpop.f32.mrf.mxu0
      %v1581 = vadd.f32 0.0, %v1580
      %v1582 = vpop.f32.mrf.mxu0
      %v1583 = vadd.f32 0.0, %v1582
      %1584 = vmatmul.bf16.gmra.mxu0 %v761
      %v1585 = vpop.f32.mrf.mxu0
      %v1586 = vadd.f32 0.0, %v1585
      %v1587 = vpop.f32.mrf.mxu0
      %v1588 = vadd.f32 0.0, %v1587
      %1589 = vmatmul.bf16.gmra.mxu0 %v762
      %v1590 = vpop.f32.mrf.mxu0
      %v1591 = vadd.f32 0.0, %v1590
      %v1592 = vpop.f32.mrf.mxu0
      %1593 = vdwg.mxu0
      %v1594 = vadd.f32 %v1276, %v1488
      %v1595 = vadd.f32 %v1334, %v1546
      %v1596 = vadd.f32 %v1278, %v1490
      %v1597 = vadd.f32 %v1336, %v1548
      %v1598 = vadd.f32 %v1281, %v1493
      %v1599 = vadd.f32 %v1339, %v1551
      %v1600 = vadd.f32 %v1283, %v1495
      %v1601 = vadd.f32 %v1341, %v1553
      %v1602 = vadd.f32 %v1286, %v1498
      %v1603 = vadd.f32 %v1344, %v1556
      %v1604 = vadd.f32 %v1288, %v1500
      %v1605 = vadd.f32 %v1346, %v1558
      %v1606 = vadd.f32 %v1291, %v1503
      %v1607 = vadd.f32 %v1349, %v1561
      %v1608 = vadd.f32 %v1293, %v1505
      %v1609 = vadd.f32 %v1351, %v1563
      %v1610 = vadd.f32 %v1296, %v1508
      %v1611 = vadd.f32 %v1354, %v1566
      %v1612 = vadd.f32 %v1298, %v1510
      %v1613 = vadd.f32 %v1356, %v1568
      %v1614 = vadd.f32 %v1301, %v1513
      %v1615 = vadd.f32 %v1359, %v1571
      %v1616 = vadd.f32 %v1303, %v1515
      %v1617 = vadd.f32 %v1361, %v1573
      %v1618 = vadd.f32 %v1306, %v1518
      %v1619 = vadd.f32 %v1364, %v1576
      %v1620 = vadd.f32 %v1308, %v1520
      %v1621 = vadd.f32 %v1366, %v1578
      %v1622 = vadd.f32 %v1311, %v1523
      %v1623 = vadd.f32 %v1369, %v1581
      %v1624 = vadd.f32 %v1313, %v1525
      %v1625 = vadd.f32 %v1371, %v1583
      %v1626 = vadd.f32 %v1316, %v1528
      %v1627 = vadd.f32 %v1374, %v1586
      %v1628 = vadd.f32 %v1318, %v1530
      %v1629 = vadd.f32 %v1376, %v1588
      %v1630 = vadd.f32 %v1321, %v1533
      %v1631 = vadd.f32 %v1379, %v1591
      %v1632 = vld [vmem:[%s6] sm:$0x3]
      %v1634 = vperm.slane %v1632, 0
      %v1635 = vperm.slane %v1632, 1
      %v1638 = vadd.f32 %v1594, %v1634
      %v1639 = vadd.f32 %v1595, %v1635
      %v1640 = vadd.f32 %v1596, %v1634
      %v1641 = vadd.f32 %v1597, %v1635
      %v1642 = vadd.f32 %v1598, %v1634
      %v1643 = vadd.f32 %v1599, %v1635
      %v1644 = vadd.f32 %v1600, %v1634
      %v1645 = vadd.f32 %v1601, %v1635
      %v1646 = vadd.f32 %v1602, %v1634
      %v1647 = vadd.f32 %v1603, %v1635
      %v1648 = vadd.f32 %v1604, %v1634
      %v1649 = vadd.f32 %v1605, %v1635
      %v1650 = vadd.f32 %v1606, %v1634
      %v1651 = vadd.f32 %v1607, %v1635
      %v1652 = vadd.f32 %v1608, %v1634
      %v1653 = vadd.f32 %v1609, %v1635
      %v1654 = vadd.f32 %v1610, %v1634
      %v1655 = vadd.f32 %v1611, %v1635
      %v1656 = vadd.f32 %v1612, %v1634
      %v1657 = vadd.f32 %v1613, %v1635
      %v1658 = vadd.f32 %v1614, %v1634
      %v1659 = vadd.f32 %v1615, %v1635
      %v1660 = vadd.f32 %v1616, %v1634
      %v1661 = vadd.f32 %v1617, %v1635
      %v1662 = vadd.f32 %v1618, %v1634
      %v1663 = vadd.f32 %v1619, %v1635
      %v1664 = vadd.f32 %v1620, %v1634
      %v1665 = vadd.f32 %v1621, %v1635
      %v1666 = vadd.f32 %v1622, %v1634
      %v1667 = vadd.f32 %v1623, %v1635
      %v1668 = vadd.f32 %v1624, %v1634
      %v1669 = vadd.f32 %v1625, %v1635
      %v1670 = vadd.f32 %v1626, %v1634
      %v1671 = vadd.f32 %v1627, %v1635
      %v1672 = vadd.f32 %v1628, %v1634
      %v1673 = vadd.f32 %v1629, %v1635
      %v1674 = vadd.f32 %v1630, %v1634
      %v1675 = vadd.f32 %v1631, %v1635
      %v1676 = vmax.f32 %v1638, 0.0
      %v1677 = vmax.f32 %v1639, 0.0
      %v1678 = vmax.f32 %v1640, 0.0
      %v1679 = vmax.f32 %v1641, 0.0
      %v1680 = vmax.f32 %v1642, 0.0
      %v1681 = vmax.f32 %v1643, 0.0
      %v1682 = vmax.f32 %v1644, 0.0
      %v1683 = vmax.f32 %v1645, 0.0
      %v1684 = vmax.f32 %v1646, 0.0
      %v1685 = vmax.f32 %v1647, 0.0
      %v1686 = vmax.f32 %v1648, 0.0
      %v1687 = vmax.f32 %v1649, 0.0
      %v1688 = vmax.f32 %v1650, 0.0
      %v1689 = vmax.f32 %v1651, 0.0
      %v1690 = vmax.f32 %v1652, 0.0
      %v1691 = vmax.f32 %v1653, 0.0
      %v1692 = vmax.f32 %v1654, 0.0
      %v1693 = vmax.f32 %v1655, 0.0
      %v1694 = vmax.f32 %v1656, 0.0
      %v1695 = vmax.f32 %v1657, 0.0
      %v1696 = vmax.f32 %v1658, 0.0
      %v1697 = vmax.f32 %v1659, 0.0
      %v1698 = vmax.f32 %v1660, 0.0
      %v1699 = vmax.f32 %v1661, 0.0
      %v1700 = vmax.f32 %v1662, 0.0
      %v1701 = vmax.f32 %v1663, 0.0
      %v1702 = vmax.f32 %v1664, 0.0
      %v1703 = vmax.f32 %v1665, 0.0
      %v1704 = vmax.f32 %v1666, 0.0
      %v1705 = vmax.f32 %v1667, 0.0
      %v1706 = vmax.f32 %v1668, 0.0
      %v1707 = vmax.f32 %v1669, 0.0
      %v1708 = vmax.f32 %v1670, 0.0
      %v1709 = vmax.f32 %v1671, 0.0
      %v1710 = vmax.f32 %v1672, 0.0
      %v1711 = vmax.f32 %v1673, 0.0
      %v1712 = vmax.f32 %v1674, 0.0
      %v1713 = vmax.f32 %v1675, 0.0
      %v1714 = vpack.c.bf16 %v1678, %v1676
      %v1715 = vpack.c.bf16 %v1679, %v1677
      %v1716 = vpack.c.bf16 %v1682, %v1680
      %v1717 = vpack.c.bf16 %v1683, %v1681
      %v1718 = vpack.c.bf16 %v1686, %v1684
      %v1719 = vpack.c.bf16 %v1687, %v1685
      %v1720 = vpack.c.bf16 %v1690, %v1688
      %v1721 = vpack.c.bf16 %v1691, %v1689
      %v1722 = vpack.c.bf16 %v1694, %v1692
      %v1723 = vpack.c.bf16 %v1695, %v1693
      %v1724 = vpack.c.bf16 %v1698, %v1696
      %v1725 = vpack.c.bf16 %v1699, %v1697
      %v1726 = vpack.c.bf16 %v1702, %v1700
      %v1727 = vpack.c.bf16 %v1703, %v1701
      %v1728 = vpack.c.bf16 %v1706, %v1704
      %v1729 = vpack.c.bf16 %v1707, %v1705
      %v1730 = vpack.c.bf16 %v1710, %v1708
      %v1731 = vpack.c.bf16 %v1711, %v1709
      %v1732 = vpack.c.bf16 %v1712, %v1712
      %v1733 = vpack.c.bf16 %v1713, %v1713
      %v1734 = vld [vmem:[%s7] sm:$0xf]
      %v1735 = vld [vmem:[%s7 + $0x4] sm:$0xf]
      %v1736 = vld [vmem:[%s7 + $0x8] sm:$0xf]
      %v1737 = vld [vmem:[%s7 + $0xc] sm:$0xf]
      %v1738 = vld [vmem:[%s7 + $0x10] sm:$0xf]
      %v1739 = vld [vmem:[%s7 + $0x14] sm:$0xf]
      %v1740 = vld [vmem:[%s7 + $0x18] sm:$0xf]
      %v1741 = vld [vmem:[%s7 + $0x1c] sm:$0xf]
      %v1742 = vld [vmem:[%s7 + $0x20] sm:$0xf]
      %v1743 = vld [vmem:[%s7 + $0x24] sm:$0xf]
      %v1744 = vld [vmem:[%s7 + $0x28] sm:$0xf]
      %v1745 = vld [vmem:[%s7 + $0x2c] sm:$0xf]
      %v1746 = vld [vmem:[%s7 + $0x30] sm:$0xf]
      %v1747 = vld [vmem:[%s7 + $0x34] sm:$0xf]
      %v1748 = vld [vmem:[%s7 + $0x38] sm:$0xf]
      %v1749 = vld [vmem:[%s7 + $0x3c] sm:$0xf]
      %v1750 = vld [vmem:[%s7 + $0x40] sm:$0xf]
      %v1751 = vld [vmem:[%s7 + $0x44] sm:$0xf]
      %v1752 = vld [vmem:[%s7 + $0x48] sm:$0xf]
      %v1753 = vld [vmem:[%s7 + $0x4c] sm:$0xf]
      %v1754 = vld [vmem:[%s7 + $0x50] sm:$0xf]
      %v1755 = vld [vmem:[%s7 + $0x54] sm:$0xf]
      %v1756 = vld [vmem:[%s7 + $0x58] sm:$0xf]
      %v1757 = vld [vmem:[%s7 + $0x5c] sm:$0xf]
      %v1758 = vld [vmem:[%s7 + $0x60] sm:$0xf]
      %v1759 = vld [vmem:[%s7 + $0x64] sm:$0xf]
      %v1760 = vld [vmem:[%s7 + $0x68] sm:$0xf]
      %v1761 = vld [vmem:[%s7 + $0x6c] sm:$0xf]
      %v1762 = vld [vmem:[%s7 + $0x70] sm:$0xf]
      %v1763 = vld [vmem:[%s7 + $0x74] sm:$0xf]
      %v1764 = vld [vmem:[%s7 + $0x78] sm:$0xf]
      %v1765 = vld [vmem:[%s7 + $0x7c] sm:$0xf]
      %v1766 = vld [vmem:[%s8] sm:$0x1]
      %v1768 = vperm.slane %v1766, 0
      %v1802 = vunpack.c.l.b16 %v1734
      %v1803 = vunpack.c.l.b16 %v1735
      %v1804 = vunpack.c.l.b16 %v1736
      %v1805 = vunpack.c.l.b16 %v1737
      %v1806 = vunpack.c.l.b16 %v1738
      %v1807 = vunpack.c.l.b16 %v1739
      %v1808 = vunpack.c.l.b16 %v1740
      %v1809 = vunpack.c.l.b16 %v1741
      %v1810 = vunpack.c.l.b16 %v1742
      %v1811 = vunpack.c.l.b16 %v1743
      %v1812 = vunpack.c.l.b16 %v1744
      %v1813 = vunpack.c.l.b16 %v1745
      %v1814 = vunpack.c.l.b16 %v1746
      %v1815 = vunpack.c.l.b16 %v1747
      %v1816 = vunpack.c.l.b16 %v1748
      %v1817 = vunpack.c.l.b16 %v1749
      %v1818 = vunpack.c.l.b16 %v1750
      %v1819 = vunpack.c.l.b16 %v1751
      %v1820 = vunpack.c.l.b16 %v1752
      %v1821 = vunpack.c.l.b16 %v1753
      %v1822 = vunpack.c.l.b16 %v1754
      %v1823 = vunpack.c.l.b16 %v1755
      %v1824 = vunpack.c.l.b16 %v1756
      %v1825 = vunpack.c.l.b16 %v1757
      %v1826 = vunpack.c.l.b16 %v1758
      %v1827 = vunpack.c.l.b16 %v1759
      %v1828 = vunpack.c.l.b16 %v1760
      %v1829 = vunpack.c.l.b16 %v1761
      %v1830 = vunpack.c.l.b16 %v1762
      %v1831 = vunpack.c.l.b16 %v1763
      %v1832 = vunpack.c.l.b16 %v1764
      %v1833 = vunpack.c.l.b16 %v1765
      %v1834 = vpack.c.b16 %v1803, %v1802
      %v1835 = vpack.c.b16 %v1805, %v1804
      %v1836 = vpack.c.b16 %v1807, %v1806
      %v1837 = vpack.c.b16 %v1809, %v1808
      %v1838 = vpack.c.b16 %v1811, %v1810
      %v1839 = vpack.c.b16 %v1813, %v1812
      %v1840 = vpack.c.b16 %v1815, %v1814
      %v1841 = vpack.c.b16 %v1817, %v1816
      %v1842 = vpack.c.b16 %v1819, %v1818
      %v1843 = vpack.c.b16 %v1821, %v1820
      %v1844 = vpack.c.b16 %v1823, %v1822
      %v1845 = vpack.c.b16 %v1825, %v1824
      %v1846 = vpack.c.b16 %v1827, %v1826
      %v1847 = vpack.c.b16 %v1829, %v1828
      %v1848 = vpack.c.b16 %v1831, %v1830
      %v1849 = vpack.c.b16 %v1833, %v1832
      %1866 = vmatpush.bf16.msra.mxu0 %v1841
      %1867 = vmatpush.bf16.msra.mxu0 %v1840
      %1868 = vmatpush.bf16.msra.mxu0 %v1839
      %1869 = vmatpush.bf16.msra.mxu0 %v1838
      %1870 = vmatpush.bf16.msra.mxu0 %v1837
      %1871 = vmatpush.bf16.msra.mxu0 %v1836
      %1872 = vmatpush.bf16.msra.mxu0 %v1835
      %1873 = vmatpush.bf16.msra.mxu0 %v1834
      %1874 = vmatmul.bf16.gmra.mxu0 %v1714
      %v1875 = vpop.f32.mrf.mxu0
      %v1876 = vadd.f32 %v1768, %v1875
      %v1877 = vpop.f32.mrf.mxu0
      %v1878 = vadd.f32 %v1768, %v1877
      %1879 = vmatmul.bf16.gmra.mxu0 %v1716
      %v1880 = vpop.f32.mrf.mxu0
      %v1881 = vadd.f32 %v1768, %v1880
      %v1882 = vpop.f32.mrf.mxu0
      %v1883 = vadd.f32 %v1768, %v1882
      %1884 = vmatmul.bf16.gmra.mxu0 %v1718
      %v1885 = vpop.f32.mrf.mxu0
      %v1886 = vadd.f32 %v1768, %v1885
      %v1887 = vpop.f32.mrf.mxu0
      %v1888 = vadd.f32 %v1768, %v1887
      %1889 = vmatmul.bf16.gmra.mxu0 %v1720
      %v1890 = vpop.f32.mrf.mxu0
      %v1891 = vadd.f32 %v1768, %v1890
      %v1892 = vpop.f32.mrf.mxu0
      %v1893 = vadd.f32 %v1768, %v1892
      %1894 = vmatmul.bf16.gmra.mxu0 %v1722
      %v1895 = vpop.f32.mrf.mxu0
      %v1896 = vadd.f32 %v1768, %v1895
      %v1897 = vpop.f32.mrf.mxu0
      %v1898 = vadd.f32 %v1768, %v1897
      %1899 = vmatmul.bf16.gmra.mxu0 %v1724
      %v1900 = vpop.f32.mrf.mxu0
      %v1901 = vadd.f32 %v1768, %v1900
      %v1902 = vpop.f32.mrf.mxu0
      %v1903 = vadd.f32 %v1768, %v1902
      %1904 = vmatmul.bf16.gmra.mxu0 %v1726
      %v1905 = vpop.f32.mrf.mxu0
      %v1906 = vadd.f32 %v1768, %v1905
      %v1907 = vpop.f32.mrf.mxu0
      %v1908 = vadd.f32 %v1768, %v1907
      %1909 = vmatmul.bf16.gmra.mxu0 %v1728
      %v1910 = vpop.f32.mrf.mxu0
      %v1911 = vadd.f32 %v1768, %v1910
      %v1912 = vpop.f32.mrf.mxu0
      %v1913 = vadd.f32 %v1768, %v1912
      %1914 = vmatmul.bf16.gmra.mxu0 %v1730
      %v1915 = vpop.f32.mrf.mxu0
      %v1916 = vadd.f32 %v1768, %v1915
      %v1917 = vpop.f32.mrf.mxu0
      %v1918 = vadd.f32 %v1768, %v1917
      %1919 = vmatmul.bf16.gmra.mxu0 %v1732
      %v1920 = vpop.f32.mrf.mxu0
      %v1921 = vadd.f32 %v1768, %v1920
      %v1922 = vpop.f32.mrf.mxu0
      %1923 = vdwg.mxu0
      %1924 = vmatpush.bf16.msra.mxu0 %v1849
      %1925 = vmatpush.bf16.msra.mxu0 %v1848
      %1926 = vmatpush.bf16.msra.mxu0 %v1847
      %1927 = vmatpush.bf16.msra.mxu0 %v1846
      %1928 = vmatpush.bf16.msra.mxu0 %v1845
      %1929 = vmatpush.bf16.msra.mxu0 %v1844
      %1930 = vmatpush.bf16.msra.mxu0 %v1843
      %1931 = vmatpush.bf16.msra.mxu0 %v1842
      %1932 = vmatmul.bf16.gmra.mxu0 %v1715
      %v1933 = vpop.f32.mrf.mxu0
      %v1934 = vadd.f32 %v1876, %v1933
      %v1935 = vpop.f32.mrf.mxu0
      %v1936 = vadd.f32 %v1878, %v1935
      %1937 = vmatmul.bf16.gmra.mxu0 %v1717
      %v1938 = vpop.f32.mrf.mxu0
      %v1939 = vadd.f32 %v1881, %v1938
      %v1940 = vpop.f32.mrf.mxu0
      %v1941 = vadd.f32 %v1883, %v1940
      %1942 = vmatmul.bf16.gmra.mxu0 %v1719
      %v1943 = vpop.f32.mrf.mxu0
      %v1944 = vadd.f32 %v1886, %v1943
      %v1945 = vpop.f32.mrf.mxu0
      %v1946 = vadd.f32 %v1888, %v1945
      %1947 = vmatmul.bf16.gmra.mxu0 %v1721
      %v1948 = vpop.f32.mrf.mxu0
      %v1949 = vadd.f32 %v1891, %v1948
      %v1950 = vpop.f32.mrf.mxu0
      %v1951 = vadd.f32 %v1893, %v1950
      %1952 = vmatmul.bf16.gmra.mxu0 %v1723
      %v1953 = vpop.f32.mrf.mxu0
      %v1954 = vadd.f32 %v1896, %v1953
      %v1955 = vpop.f32.mrf.mxu0
      %v1956 = vadd.f32 %v1898, %v1955
      %1957 = vmatmul.bf16.gmra.mxu0 %v1725
      %v1958 = vpop.f32.mrf.mxu0
      %v1959 = vadd.f32 %v1901, %v1958
      %v1960 = vpop.f32.mrf.mxu0
      %v1961 = vadd.f32 %v1903, %v1960
      %1962 = vmatmul.bf16.gmra.mxu0 %v1727
      %v1963 = vpop.f32.mrf.mxu0
      %v1964 = vadd.f32 %v1906, %v1963
      %v1965 = vpop.f32.mrf.mxu0
      %v1966 = vadd.f32 %v1908, %v1965
      %1967 = vmatmul.bf16.gmra.mxu0 %v1729
      %v1968 = vpop.f32.mrf.mxu0
      %v1969 = vadd.f32 %v1911, %v1968
      %v1970 = vpop.f32.mrf.mxu0
      %v1971 = vadd.f32 %v1913, %v1970
      %1972 = vmatmul.bf16.gmra.mxu0 %v1731
      %v1973 = vpop.f32.mrf.mxu0
      %v1974 = vadd.f32 %v1916, %v1973
      %v1975 = vpop.f32.mrf.mxu0
      %v1976 = vadd.f32 %v1918, %v1975
      %1977 = vmatmul.bf16.gmra.mxu0 %v1733
      %v1978 = vpop.f32.mrf.mxu0
      %v1979 = vadd.f32 %v1921, %v1978
      %v1980 = vpop.f32.mrf.mxu0
      %1981 = vdwg.mxu0
      %v1982 = vmax.f32 %v1934, 0.0
      %v1983 = vmax.f32 %v1936, 0.0
      %v1984 = vmax.f32 %v1939, 0.0
      %v1985 = vmax.f32 %v1941, 0.0
      %v1986 = vmax.f32 %v1944, 0.0
      %v1987 = vmax.f32 %v1946, 0.0
      %v1988 = vmax.f32 %v1949, 0.0
      %v1989 = vmax.f32 %v1951, 0.0
      %v1990 = vmax.f32 %v1954, 0.0
      %v1991 = vmax.f32 %v1956, 0.0
      %v1992 = vmax.f32 %v1959, 0.0
      %v1993 = vmax.f32 %v1961, 0.0
      %v1994 = vmax.f32 %v1964, 0.0
      %v1995 = vmax.f32 %v1966, 0.0
      %v1996 = vmax.f32 %v1969, 0.0
      %v1997 = vmax.f32 %v1971, 0.0
      %v1998 = vmax.f32 %v1974, 0.0
      %v1999 = vmax.f32 %v1976, 0.0
      %v2000 = vmax.f32 %v1979, 0.0
      %v2001 = vpack.c.bf16 %v1983, %v1982
      %v2002 = vpack.c.bf16 %v1985, %v1984
      %v2003 = vpack.c.bf16 %v1987, %v1986
      %v2004 = vpack.c.bf16 %v1989, %v1988
      %v2005 = vpack.c.bf16 %v1991, %v1990
      %v2006 = vpack.c.bf16 %v1993, %v1992
      %v2007 = vpack.c.bf16 %v1995, %v1994
      %v2008 = vpack.c.bf16 %v1997, %v1996
      %v2009 = vpack.c.bf16 %v1999, %v1998
      %v2010 = vpack.c.bf16 %v2000, %v2000
      %v2011 = vld [vmem:[%s9] sm:$0xf]
      %v2012 = vld [vmem:[%s9 + $0x4] sm:$0xf]
      %v2013 = vld [vmem:[%s9 + $0x8] sm:$0xf]
      %v2014 = vld [vmem:[%s9 + $0xc] sm:$0xf]
      %v2015 = vld [vmem:[%s9 + $0x10] sm:$0xf]
      %v2016 = vld [vmem:[%s9 + $0x14] sm:$0xf]
      %v2017 = vld [vmem:[%s9 + $0x18] sm:$0xf]
      %v2018 = vld [vmem:[%s9 + $0x1c] sm:$0xf]
      %v2019 = vld [vmem:[%s10] sm:$0x1]
      %v2021 = vperm.slane %v2019, 0
      %v2031 = vunpack.c.l.b16 %v2011
      %v2032 = vunpack.c.l.b16 %v2012
      %v2033 = vunpack.c.l.b16 %v2013
      %v2034 = vunpack.c.l.b16 %v2014
      %v2035 = vunpack.c.l.b16 %v2015
      %v2036 = vunpack.c.l.b16 %v2016
      %v2037 = vunpack.c.l.b16 %v2017
      %v2038 = vunpack.c.l.b16 %v2018
      %v2039 = vpack.c.b16 %v2032, %v2031
      %v2040 = vpack.c.b16 %v2034, %v2033
      %v2041 = vpack.c.b16 %v2036, %v2035
      %v2042 = vpack.c.b16 %v2038, %v2037
      %v2048 = vsel %vm1235, %v2001, 0
      %v2051 = vsel %vm1235, %v2002, 0
      %v2054 = vsel %vm1235, %v2003, 0
      %v2057 = vsel %vm1235, %v2004, 0
      %v2060 = vsel %vm1235, %v2005, 0
      %v2063 = vsel %vm1235, %v2006, 0
      %v2066 = vsel %vm1235, %v2007, 0
      %v2069 = vsel %vm1235, %v2008, 0
      %v2072 = vsel %vm1235, %v2009, 0
      %v2075 = vsel %vm1235, %v2010, 0
      %2077 = vmatpush.bf16.msra.mxu0 0
      %2078 = vmatpush.bf16.msra.mxu0 0
      %2079 = vmatpush.bf16.msra.mxu0 0
      %2080 = vmatpush.bf16.msra.mxu0 0
      %2081 = vmatpush.bf16.msra.mxu0 %v2042
      %2082 = vmatpush.bf16.msra.mxu0 %v2041
      %2083 = vmatpush.bf16.msra.mxu0 %v2040
      %2084 = vmatpush.bf16.msra.mxu0 %v2039
      %2085 = vmatmul.bf16.gmra.mxu0 %v2048
      %v2086 = vpop.f32.mrf.mxu0
      %v2087 = vadd.f32 %v2021, %v2086
      %v2088 = vpop.f32.mrf.mxu0
      %v2089 = vadd.f32 %v2021, %v2088
      %2090 = vmatmul.bf16.gmra.mxu0 %v2051
      %v2091 = vpop.f32.mrf.mxu0
      %v2092 = vadd.f32 %v2021, %v2091
      %v2093 = vpop.f32.mrf.mxu0
      %v2094 = vadd.f32 %v2021, %v2093
      %2095 = vmatmul.bf16.gmra.mxu0 %v2054
      %v2096 = vpop.f32.mrf.mxu0
      %v2097 = vadd.f32 %v2021, %v2096
      %v2098 = vpop.f32.mrf.mxu0
      %v2099 = vadd.f32 %v2021, %v2098
      %2100 = vmatmul.bf16.gmra.mxu0 %v2057
      %v2101 = vpop.f32.mrf.mxu0
      %v2102 = vadd.f32 %v2021, %v2101
      %v2103 = vpop.f32.mrf.mxu0
      %v2104 = vadd.f32 %v2021, %v2103
      %2105 = vmatmul.bf16.gmra.mxu0 %v2060
      %v2106 = vpop.f32.mrf.mxu0
      %v2107 = vadd.f32 %v2021, %v2106
      %v2108 = vpop.f32.mrf.mxu0
      %v2109 = vadd.f32 %v2021, %v2108
      %2110 = vmatmul.bf16.gmra.mxu0 %v2063
      %v2111 = vpop.f32.mrf.mxu0
      %v2112 = vadd.f32 %v2021, %v2111
      %v2113 = vpop.f32.mrf.mxu0
      %v2114 = vadd.f32 %v2021, %v2113
      %2115 = vmatmul.bf16.gmra.mxu0 %v2066
      %v2116 = vpop.f32.mrf.mxu0
      %v2117 = vadd.f32 %v2021, %v2116
      %v2118 = vpop.f32.mrf.mxu0
      %v2119 = vadd.f32 %v2021, %v2118
      %2120 = vmatmul.bf16.gmra.mxu0 %v2069
      %v2121 = vpop.f32.mrf.mxu0
      %v2122 = vadd.f32 %v2021, %v2121
      %v2123 = vpop.f32.mrf.mxu0
      %v2124 = vadd.f32 %v2021, %v2123
      %2125 = vmatmul.bf16.gmra.mxu0 %v2072
      %v2126 = vpop.f32.mrf.mxu0
      %v2127 = vadd.f32 %v2021, %v2126
      %v2128 = vpop.f32.mrf.mxu0
      %v2129 = vadd.f32 %v2021, %v2128
      %2130 = vmatmul.bf16.gmra.mxu0 %v2075
      %v2131 = vpop.f32.mrf.mxu0
      %v2132 = vadd.f32 %v2021, %v2131
      %v2133 = vpop.f32.mrf.mxu0
      %2134 = vdwg.mxu0
      %v2135 = vadd.f32 %v2087, %v435
      %v2136 = vadd.f32 %v2089, %v436
      %v2137 = vadd.f32 %v2092, %v437
      %v2138 = vadd.f32 %v2094, %v438
      %v2139 = vadd.f32 %v2097, %v439
      %v2140 = vadd.f32 %v2099, %v440
      %v2141 = vadd.f32 %v2102, %v441
      %v2142 = vadd.f32 %v2104, %v442
      %v2143 = vadd.f32 %v2107, %v443
      %v2144 = vadd.f32 %v2109, %v444
      %v2145 = vadd.f32 %v2112, %v445
      %v2146 = vadd.f32 %v2114, %v446
      %v2147 = vadd.f32 %v2117, %v447
      %v2148 = vadd.f32 %v2119, %v448
      %v2149 = vadd.f32 %v2122, %v449
      %v2150 = vadd.f32 %v2124, %v450
      %v2151 = vadd.f32 %v2127, %v451
      %v2152 = vadd.f32 %v2129, %v452
      %v2153 = vadd.f32 %v2132, %v453
      %2154 = vst.msk [vmem:[%s432] sm:$0xff] %vm1235, %v2135
      %2155 = vst.msk [vmem:[%s432 + $0x8] sm:$0xff] %vm1235, %v2136
      %2156 = vst.msk [vmem:[%s432 + $0x10] sm:$0xff] %vm1235, %v2137
      %2157 = vst.msk [vmem:[%s432 + $0x18] sm:$0xff] %vm1235, %v2138
      %2158 = vst.msk [vmem:[%s432 + $0x20] sm:$0xff] %vm1235, %v2139
      %2159 = vst.msk [vmem:[%s432 + $0x28] sm:$0xff] %vm1235, %v2140
      %2160 = vst.msk [vmem:[%s432 + $0x30] sm:$0xff] %vm1235, %v2141
      %2161 = vst.msk [vmem:[%s432 + $0x38] sm:$0xff] %vm1235, %v2142
      %2162 = vst.msk [vmem:[%s432 + $0x40] sm:$0xff] %vm1235, %v2143
      %2163 = vst.msk [vmem:[%s432 + $0x48] sm:$0xff] %vm1235, %v2144
      %2164 = vst.msk [vmem:[%s432 + $0x50] sm:$0xff] %vm1235, %v2145
      %2165 = vst.msk [vmem:[%s432 + $0x58] sm:$0xff] %vm1235, %v2146
      %2166 = vst.msk [vmem:[%s432 + $0x60] sm:$0xff] %vm1235, %v2147
      %2167 = vst.msk [vmem:[%s432 + $0x68] sm:$0xff] %vm1235, %v2148
      %2168 = vst.msk [vmem:[%s432 + $0x70] sm:$0xff] %vm1235, %v2149
      %2169 = vst.msk [vmem:[%s432 + $0x78] sm:$0xff] %vm1235, %v2150
      %2170 = vst.msk [vmem:[%s432 + $0x80] sm:$0xff] %vm1235, %v2151
      %2171 = vst.msk [vmem:[%s432 + $0x88] sm:$0xff] %vm1235, %v2152
      %2172 = vst.msk [vmem:[%s432 + $0x90] sm:$0xff] %vm1235, %v2153
      %s2173 = smul.u32 19, %s22
      %p2174 = scmp.lt.s32.totalorder %s2173, 37
      %s2175 = scalar_select %p2174, %s2173, 37
      %s2176 = smul.addr %s2175, 8
      %s2177 = scalar_lea.vmem %s11, %s2176
      // Predicated region
      $region65: #{key_network_forward.1} parent=63 // pred_check
        %p2178 = pneg %p286
      $region66: #{key_network_forward.1} parent=63 // pred_check_branch
        %2180 = sbr.rel (%p2178) target = $region68
      $region67: #{key_network_forward.1} parent=63 // pred_region
        %s2181 = smul.u32 19, %s22
      $region68: #{key_network_forward.1} parent=63 // pred_fallthru
        _
    $region64: #{key_network_forward.1} parent=5 // pred_fallthru
      _
    %p2182 = scmp.le.s32.totalorder 2, %s17
    // Predicated region
    $region69: #{key_network_forward.1} parent=5 // pred_check
      %p2183 = pneg %p2182
    $region70: #{key_network_forward.1} parent=5 // pred_check_branch
      %2185 = sbr.rel (%p2183) target = $region72
    $region71: #{key_network_forward.1} parent=5 // pred_region
      %s2186 = ssub.s32 %s17, 2
      // Predicated region
      $region73: #{key_network_forward.1} parent=71 // pred_check
        %p2187 = pneg %p292
      $region74: #{key_network_forward.1} parent=71 // pred_check_branch
        %2189 = sbr.rel (%p2187) target = $region76
      $region75: #{key_network_forward.1} parent=71 // pred_region
        %s2190 = smul.u32 19, %s23
        %p2191 = scmp.lt.s32.totalorder %s2190, 37
        %s2192 = scalar_select %p2191, %s2190, 37
        %s2193 = smul.addr %s2192, 8
        %s2194 = scalar_lea.vmem %s11, %s2193
      $region76: #{key_network_forward.1} parent=71 // pred_fallthru
        _
    $region72: #{key_network_forward.1} parent=5 // pred_fallthru
      _
  $region6: #{key_network_forward.1} parent=0 // loop_footer
    %s21 = sadd.s32 1, %s17
  $region7: #{key_network_forward.1} parent=0 // loop_footer_branch
    %16 = sbr.rel target = $region3
  $region8: #{key_network_forward.1} parent=0 // loop_exit
    _

</llo_original>
